<compile_context>
chip_gen: v7x
topology: tpu7x:2x2x1
jax: 0.10.0
libtpu: 0.0.40
codegen_flags: <defaults>
</compile_context>

<pallas_src>
import functools
import math

import jax
import jax.numpy as jnp
from jax.experimental import pallas as pl
from jax.experimental.pallas import tpu as pltpu


def _mha_kernel(x_ref, wqkv_ref, wo_ref, bo_ref, out_ref, k_scr, v_scr, *,
                num_heads, scale, mxu_dtype, approx_recip):
    # x_ref:    (1, tq, d_in)        current query tile of x
    # wqkv_ref: (d_in, 3*d_out)      pre-transposed fused Q|K|V projection
    # wo_ref:   (d_out, d_out)       pre-transposed output projection
    # bo_ref:   (1, d_out)           output projection bias (f32)
    # out_ref:  (1, tq, d_out)
    # k_scr/v_scr: (n_q_tiles, H, tq, hd)  per-batch K/V cache, head-split,
    #                                      persistent VMEM scratch
    qi = pl.program_id(1)

    H = num_heads
    _n_kv_tiles, _, tq, hd = k_scr.shape
    d_out = H * hd
    tk = tq  # kv tile == q tile; causal early-exit is simply j in [0, qi]

    # ---- Fused Q/K/V projection for this tile's rows (one MXU matmul) -------
    x = x_ref[0]                                                       # (tq, d_in)
    qkv = jnp.dot(x, wqkv_ref[...],
                  preferred_element_type=jnp.float32)                  # (tq, 3*d_out) f32
    q = qkv[:, :d_out] * scale          # fold 1/sqrt(d_out) into Q (not scores)
    k = qkv[:, d_out:2 * d_out]
    v = qkv[:, 2 * d_out:]

    # Head-split ONCE, at projection time: (tq, d_out) -> (H, tq, hd).
    qh = q.reshape(tq, H, hd).swapaxes(0, 1).astype(mxu_dtype)         # (H, tq, hd)
    kh = k.reshape(tq, H, hd).swapaxes(0, 1).astype(mxu_dtype)
    vh = v.reshape(tq, H, hd).swapaxes(0, 1).astype(mxu_dtype)

    # ---- Incremental K/V cache: append this tile's rows --------------------
    # Causality means q-tile qi only ever attends to rows < (qi+1)*tq, all of
    # which were written during this batch's earlier (or current) iterations.
    k_scr[qi] = kh
    v_scr[qi] = vh

    # ---- Flash-style online softmax over resident kv tiles j = 0..qi -------
    neg_big = jnp.float32(-1e30)
    row_ids = qi * tq + jax.lax.broadcasted_iota(jnp.int32, (tq, tk), 0)
    col_loc = jax.lax.broadcasted_iota(jnp.int32, (tq, tk), 1)

    def kv_step(j, carry):
        m, l, acc = carry
        kj = k_scr[j]                                                  # (H, tk, hd)
        vj = v_scr[j]
        s = jnp.einsum('hqd,hkd->hqk', qh, kj,
                       preferred_element_type=jnp.float32)             # (H, tq, tk)
        # In-kernel causal bias (all zero for j < qi; strict upper-tri on j==qi).
        bias = jnp.where(row_ids >= j * tk + col_loc,
                         jnp.float32(0.0), neg_big)
        s = s + bias[None, :, :]
        m_new = jnp.maximum(m, s.max(axis=-1, keepdims=True))
        alpha = jnp.exp(m - m_new)
        p = jnp.exp(s - m_new)
        l_new = alpha * l + p.sum(axis=-1, keepdims=True)
        acc_new = alpha * acc + jnp.einsum(
            'hqk,hkd->hqd', p.astype(mxu_dtype), vj,
            preferred_element_type=jnp.float32)
        return m_new, l_new, acc_new

    m0 = jnp.full((H, tq, 1), neg_big, jnp.float32)
    l0 = jnp.zeros((H, tq, 1), jnp.float32)
    acc0 = jnp.zeros((H, tq, hd), jnp.float32)
    _, l, acc = jax.lax.fori_loop(0, qi + 1, kv_step, (m0, l0, acc0))

    # TODO(synk): attention-weight dropout skipped (identity / eval semantics).

    # ---- Normalize (EUP reciprocal), merge heads, output projection --------
    ctx = acc * pl.reciprocal(l, approx=approx_recip)                  # (H, tq, hd) f32
    ctx = ctx.swapaxes(0, 1).reshape(tq, d_out).astype(mxu_dtype)      # (tq, d_out)
    out = jnp.dot(ctx, wo_ref[...], preferred_element_type=jnp.float32)
    out_ref[0] = (out + bo_ref[...]).astype(out_ref.dtype)


def _const_spec(block_shape, index_map):
    """Constant-index inputs: single-buffer them (their index_map never changes,
    so double buffering only wastes VMEM).  Fall back if the installed JAX does
    not expose pipeline_mode / Buffered."""
    try:
        return pl.BlockSpec(block_shape, index_map, pipeline_mode=pl.Buffered(1))
    except (TypeError, AttributeError):
        return pl.BlockSpec(block_shape, index_map)


def multi_head_attention(x, Wq, Wk, Wv, Wo, bo, num_heads, *,
                         mxu_dtype=jnp.bfloat16, q_tile=256, out_dtype=None):
    """x: (B, S, d_in); Wq/Wk/Wv: (d_out, d_in) PyTorch-style; Wo: (d_out, d_out); bo: (d_out,).

    q_tile: 256 is sized for v6e/v7x's 256-wide MXU; use 128 on v5e if desired.
    """
    B, S, d_in = x.shape
    d_out = Wq.shape[0]
    assert d_out % num_heads == 0, 'd_out must be divisible by num_heads'
    hd = d_out // num_heads
    out_dtype = x.dtype if out_dtype is None else out_dtype
    scale = 1.0 / math.sqrt(d_out)       # matches reference: scores / d_out**0.5

    tq = min(q_tile, S)
    assert S % tq == 0, "seq length must be divisible by the query tile"
    nqt = S // tq

    # y = x @ W.T  ->  pass W.T; fuse Q|K|V into one weight block (one matmul).
    wqkv_t = jnp.concatenate([Wq.T, Wk.T, Wv.T], axis=1).astype(mxu_dtype)  # (d_in, 3*d_out)
    wo_t = Wo.T.astype(mxu_dtype)                                           # (d_out, d_out)
    bo2 = bo.reshape(1, d_out).astype(jnp.float32)
    x_in = x.astype(mxu_dtype)

    mxu_bytes = jnp.dtype(mxu_dtype).itemsize
    out_bytes = jnp.dtype(out_dtype).itemsize
    hd_pad = max(hd, 128)                # lane padding of the head dim in scratch
    working_set = (
        2 * nqt * num_heads * tq * hd_pad * mxu_bytes                 # K/V scratch
        + (d_in * 3 * d_out + d_out * d_out) * mxu_bytes + d_out * 4  # single-buffered consts
        + 2 * tq * d_in * mxu_bytes                                   # x tile (double buffer)
        + 2 * tq * d_out * out_bytes                                  # out tile (double buffer)
        + 4 * num_heads * tq * tq * 4                                 # s/p/bias f32 temporaries
        + num_heads * tq * (hd_pad + 16) * 4                          # acc/m/l carries
        + 2 * tq * 3 * d_out * 4                                      # qkv f32 projection temp
    )
    # Leave headroom; keep under every chip's physical VMEM at small shapes.
    vmem_limit = int(min(96 * 2**20, max(2 * working_set, 32 * 2**20)))

    kernel = functools.partial(
        _mha_kernel, num_heads=num_heads, scale=scale, mxu_dtype=mxu_dtype,
        approx_recip=(jnp.dtype(mxu_dtype) != jnp.dtype(jnp.float32)))

    return pl.pallas_call(
        kernel,
        out_shape=jax.ShapeDtypeStruct((B, S, d_out), out_dtype),
        grid_spec=pltpu.PrefetchScalarGridSpec(
            num_scalar_prefetch=0,
            grid=(B, nqt),
            in_specs=[
                pl.BlockSpec((1, tq, d_in), lambda b, qi: (b, qi, 0)),   # x q-tile
                _const_spec((d_in, 3 * d_out), lambda b, qi: (0, 0)),    # [Wq|Wk|Wv].T
                _const_spec((d_out, d_out), lambda b, qi: (0, 0)),       # Wo.T
                _const_spec((1, d_out), lambda b, qi: (0, 0)),           # out bias
            ],
            out_specs=pl.BlockSpec((1, tq, d_out), lambda b, qi: (b, qi, 0)),
            scratch_shapes=[
                pltpu.VMEM((nqt, num_heads, tq, hd), mxu_dtype),   # K cache (head-split)
                pltpu.VMEM((nqt, num_heads, tq, hd), mxu_dtype),   # V cache (head-split)
            ],
        ),
        compiler_params=pltpu.CompilerParams(
            # batch axis parallel (megacore); q-tile axis "arbitrary" because
            # the incrementally-written K/V scratch is reused by later q-tiles.
            dimension_semantics=("parallel", "arbitrary"),
            vmem_limit_bytes=vmem_limit,
        ),
    )(x_in, wqkv_t, wo_t, bo2)


def multi_head_attention_ref(x, Wq, Wk, Wv, Wo, bo, num_heads):
    """Pure-JAX reference mirroring the PyTorch forward exactly (dropout=identity)."""
    B, S, d_in = x.shape
    d_out = Wq.shape[0]
    hd = d_out // num_heads
    q = (x @ Wq.T).reshape(B, S, num_heads, hd).transpose(0, 2, 1, 3)
    k = (x @ Wk.T).reshape(B, S, num_heads, hd).transpose(0, 2, 1, 3)
    v = (x @ Wv.T).reshape(B, S, num_heads, hd).transpose(0, 2, 1, 3)
    scores = q @ jnp.swapaxes(k, -2, -1)
    mask = jnp.triu(jnp.ones((S, S), dtype=bool), k=1)
    scores = jnp.where(mask, -jnp.inf, scores)
    w = jax.nn.softmax(scores / math.sqrt(d_out), axis=-1)
    ctx = (w @ v).transpose(0, 2, 1, 3).reshape(B, S, d_out)
    return ctx @ Wo.T + bo


if __name__ == "__main__":
    # Small deterministic setup consistent with the module.
    B, S, d_in, d_out, num_heads = 2, 8, 32, 32, 4
    context_length = S
    dropout = 0.1          # identity at inference
    qkv_bias = False       # default: Q/K/V have no bias

    key = jax.random.PRNGKey(0)
    kx, kq, kk, kv, ko, kb = jax.random.split(key, 6)
    x = jax.random.normal(kx, (B, S, d_in), dtype=jnp.float32)
    Wq = 0.1 * jax.random.normal(kq, (d_out, d_in), dtype=jnp.float32)
    Wk = 0.1 * jax.random.normal(kk, (d_out, d_in), dtype=jnp.float32)
    Wv = 0.1 * jax.random.normal(kv, (d_out, d_in), dtype=jnp.float32)
    Wo = 0.1 * jax.random.normal(ko, (d_out, d_out), dtype=jnp.float32)
    bo = 0.1 * jax.random.normal(kb, (d_out,), dtype=jnp.float32)

    ref = multi_head_attention_ref(x, Wq, Wk, Wv, Wo, bo, num_heads)

    # f32 MXU path: tight check of the kernel structure (exact reciprocal).
    out_f32 = multi_head_attention(x, Wq, Wk, Wv, Wo, bo, num_heads,
                                   mxu_dtype=jnp.float32)
    out_f32 = jax.block_until_ready(out_f32)
    assert out_f32.shape == (B, S, d_out)
    assert jnp.allclose(out_f32, ref, rtol=2e-3, atol=2e-3), "f32 mismatch vs reference"

    # bf16 MXU path with bf16 output (default recommended on v5e/v6e/v7x).
    out_bf16 = multi_head_attention(x, Wq, Wk, Wv, Wo, bo, num_heads,
                                    out_dtype=jnp.bfloat16)
    out_bf16 = jax.block_until_ready(out_bf16)
    assert out_bf16.shape == (B, S, d_out)
    assert jnp.allclose(out_bf16.astype(jnp.float32), ref,
                        rtol=5e-2, atol=5e-2), "bf16 mismatch vs reference"

    print("KERNEL_OK")
</pallas_src>

<mosaic_0001>
module attributes {stable_mosaic.version = 11 : i64} {
  func.func @_mha_kernel(%arg0: i32, %arg1: i32, %arg2: memref<1x8x32xf32, #tpu.memory_space<vmem>>, %arg3: memref<32x96xf32, #tpu.memory_space<vmem>>, %arg4: memref<32x32xf32, #tpu.memory_space<vmem>>, %arg5: memref<1x32xf32, #tpu.memory_space<vmem>>, %arg6: memref<1x8x32xf32, #tpu.memory_space<vmem>>, %arg7: memref<1x4x8x8xf32, #tpu.memory_space<vmem>>, %arg8: memref<1x4x8x8xf32, #tpu.memory_space<vmem>>) attributes {dimension_semantics = [#tpu.dimension_semantics<parallel>, #tpu.dimension_semantics<arbitrary>], iteration_bounds = array<i64: 2, 1>, scalar_prefetch = 0 : i64, scratch_operands = 2 : i64, tpu.core_type = #tpu.core_type<tc>, window_params = [{transform_indices = @transform_0, window_bounds = array<i64: 1, 8, 32>}, {pipeline_mode = #tpu.pipeline_mode<synchronous>, transform_indices = @transform_1, window_bounds = array<i64: 32, 96>}, {pipeline_mode = #tpu.pipeline_mode<synchronous>, transform_indices = @transform_2, window_bounds = array<i64: 32, 32>}, {pipeline_mode = #tpu.pipeline_mode<synchronous>, transform_indices = @transform_3, window_bounds = array<i64: 1, 32>}, {transform_indices = @transform_4, window_bounds = array<i64: 1, 8, 32>}]} {
    %c0 = arith.constant 0 : index
    %c0_0 = arith.constant 0 : index
    %c0_1 = arith.constant 0 : index
    %0 = vector.load %arg2[%c0, %c0_0, %c0_1] : memref<1x8x32xf32, #tpu.memory_space<vmem>>, vector<1x8x32xf32>
    %1 = vector.shape_cast %0 : vector<1x8x32xf32> to vector<8x32xf32>
    %c0_2 = arith.constant 0 : index
    %c0_3 = arith.constant 0 : index
    %2 = vector.load %arg3[%c0_2, %c0_3] : memref<32x96xf32, #tpu.memory_space<vmem>>, vector<32x96xf32>
    %cst = arith.constant dense<0.000000e+00> : vector<8x96xf32>
    %3 = tpu.matmul %1, %2, %cst {dimension_numbers = #tpu.dot_dimension_numbers<[1], [0], [0], [1], [0, 0, 1, 1], [], []>} : vector<8x32xf32>, vector<32x96xf32>, vector<8x96xf32> -> vector<8x96xf32>
    %4 = vector.extract_strided_slice %3 {offsets = [0, 0], sizes = [8, 32], strides = [1, 1]} : vector<8x96xf32> to vector<8x32xf32>
    %cst_4 = arith.constant 0.176776692 : f32
    %5 = vector.broadcast %cst_4 : f32 to vector<8x32xf32>
    %6 = arith.mulf %4, %5 : vector<8x32xf32>
    %7 = vector.extract_strided_slice %3 {offsets = [0, 32], sizes = [8, 32], strides = [1, 1]} : vector<8x96xf32> to vector<8x32xf32>
    %8 = vector.extract_strided_slice %3 {offsets = [0, 64], sizes = [8, 32], strides = [1, 1]} : vector<8x96xf32> to vector<8x32xf32>
    %9 = vector.shape_cast %6 : vector<8x32xf32> to vector<8x4x8xf32>
    %10 = tpu.transpose %9, [1, 0, 2] : vector<8x4x8xf32> -> vector<4x8x8xf32>
    %11 = vector.shape_cast %7 : vector<8x32xf32> to vector<8x4x8xf32>
    %12 = tpu.transpose %11, [1, 0, 2] : vector<8x4x8xf32> -> vector<4x8x8xf32>
    %13 = vector.shape_cast %8 : vector<8x32xf32> to vector<8x4x8xf32>
    %14 = tpu.transpose %13, [1, 0, 2] : vector<8x4x8xf32> -> vector<4x8x8xf32>
    %15 = arith.index_cast %arg1 : i32 to index
    %c0_5 = arith.constant 0 : index
    %c0_6 = arith.constant 0 : index
    %c0_7 = arith.constant 0 : index
    %16 = vector.load %arg7[%15, %c0_5, %c0_6, %c0_7] : memref<1x4x8x8xf32, #tpu.memory_space<vmem>>, vector<1x4x8x8xf32>
    %17 = vector.shape_cast %16 : vector<1x4x8x8xf32> to vector<4x8x8xf32>
    %18 = vector.shape_cast %12 : vector<4x8x8xf32> to vector<1x4x8x8xf32>
    tpu.vector_store %arg7[%15, %c0_5, %c0_6, %c0_7], %18 {strides = array<i32>} : memref<1x4x8x8xf32, #tpu.memory_space<vmem>>, vector<1x4x8x8xf32>,
    %19 = arith.index_cast %arg1 : i32 to index
    %c0_8 = arith.constant 0 : index
    %c0_9 = arith.constant 0 : index
    %c0_10 = arith.constant 0 : index
    %20 = vector.load %arg8[%19, %c0_8, %c0_9, %c0_10] : memref<1x4x8x8xf32, #tpu.memory_space<vmem>>, vector<1x4x8x8xf32>
    %21 = vector.shape_cast %20 : vector<1x4x8x8xf32> to vector<4x8x8xf32>
    %22 = vector.shape_cast %14 : vector<4x8x8xf32> to vector<1x4x8x8xf32>
    tpu.vector_store %arg8[%19, %c0_8, %c0_9, %c0_10], %22 {strides = array<i32>} : memref<1x4x8x8xf32, #tpu.memory_space<vmem>>, vector<1x4x8x8xf32>,
    %c8_i32 = arith.constant 8 : i32
    %23 = arith.muli %arg1, %c8_i32 : i32
    %24 = tpu.iota {dimensions = array<i32: 0>} : vector<8x8xi32>
    %25 = vector.broadcast %23 : i32 to vector<8x8xi32>
    %26 = arith.addi %25, %24 : vector<8x8xi32>
    %27 = tpu.iota {dimensions = array<i32: 1>} : vector<8x8xi32>
    %cst_11 = arith.constant -1.000000e+30 : f32
    %28 = vector.broadcast %cst_11 : f32 to vector<4x8x1xf32>
    %cst_12 = arith.constant 0.000000e+00 : f32
    %29 = vector.broadcast %cst_12 : f32 to vector<4x8x1xf32>
    %cst_13 = arith.constant 0.000000e+00 : f32
    %30 = vector.broadcast %cst_13 : f32 to vector<4x8x8xf32>
    %c1_i32 = arith.constant 1 : i32
    %31 = arith.addi %arg1, %c1_i32 : i32
    %cst_14 = arith.constant -1.000000e+30 : f32
    %c0_i32 = arith.constant 0 : i32
    %32 = arith.subi %31, %c0_i32 : i32
    %33 = arith.addi %c0_i32, %32 : i32
    %c1_i32_15 = arith.constant 1 : i32
    %34:3 = scf.for %arg9 = %c0_i32 to %33 step %c1_i32_15 iter_args(%arg10 = %28, %arg11 = %29, %arg12 = %30) -> (vector<4x8x1xf32>, vector<4x8x1xf32>, vector<4x8x8xf32>)  : i32 {
      %48 = arith.index_cast %arg9 : i32 to index
      %c0_24 = arith.constant 0 : index
      %c0_25 = arith.constant 0 : index
      %c0_26 = arith.constant 0 : index
      %49 = vector.load %arg7[%48, %c0_24, %c0_25, %c0_26] : memref<1x4x8x8xf32, #tpu.memory_space<vmem>>, vector<1x4x8x8xf32>
      %50 = vector.shape_cast %49 : vector<1x4x8x8xf32> to vector<4x8x8xf32>
      %51 = arith.index_cast %arg9 : i32 to index
      %c0_27 = arith.constant 0 : index
      %c0_28 = arith.constant 0 : index
      %c0_29 = arith.constant 0 : index
      %52 = vector.load %arg8[%51, %c0_27, %c0_28, %c0_29] : memref<1x4x8x8xf32, #tpu.memory_space<vmem>>, vector<1x4x8x8xf32>
      %53 = vector.shape_cast %52 : vector<1x4x8x8xf32> to vector<4x8x8xf32>
      "tpu.trace_start"() <{level = 10 : i32, message = "hqd,hkd->hqk"}> : () -> ()
      %cst_30 = arith.constant dense<0.000000e+00> : vector<4x8x8xf32>
      %54 = tpu.matmul %10, %50, %cst_30 {dimension_numbers = #tpu.dot_dimension_numbers<[2], [2], [1], [1], [0, 0, 0, 1, 1, 1], [0], [0]>} : vector<4x8x8xf32>, vector<4x8x8xf32>, vector<4x8x8xf32> -> vector<4x8x8xf32>
      "tpu.trace_stop"() : () -> ()
      %c8_i32_31 = arith.constant 8 : i32
      %55 = arith.muli %arg9, %c8_i32_31 : i32
      %56 = vector.broadcast %55 : i32 to vector<8x8xi32>
      %57 = arith.addi %56, %27 : vector<8x8xi32>
      %58 = arith.cmpi sge, %26, %57 : vector<8x8xi32>
      %cst_32 = arith.constant 0.000000e+00 : f32
      %59 = vector.broadcast %cst_32 : f32 to vector<8x8xf32>
      %60 = vector.broadcast %cst_14 : f32 to vector<8x8xf32>
      %61 = arith.select %58, %59, %60 : vector<8x8xi1>, vector<8x8xf32>
      %62 = vector.shape_cast %61 : vector<8x8xf32> to vector<1x8x8xf32>
      %63 = vector.broadcast %62 : vector<1x8x8xf32> to vector<4x8x8xf32>
      %64 = arith.addf %54, %63 : vector<4x8x8xf32>
      %cst_33 = arith.constant dense<0xFF800000> : vector<4x8xf32>
      %65 = vector.multi_reduction <maximumf>, %64, %cst_33 [2] : vector<4x8x8xf32> to vector<4x8xf32>
      %66 = vector.shape_cast %65 : vector<4x8xf32> to vector<4x8x1xf32>
      %67 = arith.maximumf %arg10, %66 : vector<4x8x1xf32>
      %68 = arith.subf %arg10, %67 : vector<4x8x1xf32>
      %69 = math.exp %68 : vector<4x8x1xf32>
      %70 = vector.broadcast %67 : vector<4x8x1xf32> to vector<4x8x8xf32>
      %71 = arith.subf %64, %70 : vector<4x8x8xf32>
      %72 = math.exp %71 : vector<4x8x8xf32>
      %73 = arith.mulf %69, %arg11 : vector<4x8x1xf32>
      %cst_34 = arith.constant dense<0.000000e+00> : vector<4x8xf32>
      %74 = vector.multi_reduction <add>, %72, %cst_34 [2] : vector<4x8x8xf32> to vector<4x8xf32>
      %75 = vector.shape_cast %74 : vector<4x8xf32> to vector<4x8x1xf32>
      %76 = arith.addf %73, %75 : vector<4x8x1xf32>
      %77 = vector.broadcast %69 : vector<4x8x1xf32> to vector<4x8x8xf32>
      %78 = arith.mulf %77, %arg12 : vector<4x8x8xf32>
      "tpu.trace_start"() <{level = 10 : i32, message = "hqk,hkd->hqd"}> : () -> ()
      %cst_35 = arith.constant dense<0.000000e+00> : vector<4x8x8xf32>
      %79 = tpu.matmul %72, %53, %cst_35 {dimension_numbers = #tpu.dot_dimension_numbers<[2], [1], [1], [2], [0, 0, 0, 1, 1, 2], [0], [0]>} : vector<4x8x8xf32>, vector<4x8x8xf32>, vector<4x8x8xf32> -> vector<4x8x8xf32>
      "tpu.trace_stop"() : () -> ()
      %80 = arith.addf %78, %79 : vector<4x8x8xf32>
      scf.yield %67, %76, %80 : vector<4x8x1xf32>, vector<4x8x1xf32>, vector<4x8x8xf32>
    }
    %35 = tpu.reciprocal %34#1 : vector<4x8x1xf32> -> vector<4x8x1xf32>
    %36 = vector.broadcast %35 : vector<4x8x1xf32> to vector<4x8x8xf32>
    %37 = arith.mulf %34#2, %36 : vector<4x8x8xf32>
    %38 = tpu.transpose %37, [1, 0, 2] : vector<4x8x8xf32> -> vector<8x4x8xf32>
    %39 = vector.shape_cast %38 : vector<8x4x8xf32> to vector<8x32xf32>
    %c0_16 = arith.constant 0 : index
    %c0_17 = arith.constant 0 : index
    %40 = vector.load %arg4[%c0_16, %c0_17] : memref<32x32xf32, #tpu.memory_space<vmem>>, vector<32x32xf32>
    %cst_18 = arith.constant dense<0.000000e+00> : vector<8x32xf32>
    %41 = tpu.matmul %39, %40, %cst_18 {dimension_numbers = #tpu.dot_dimension_numbers<[1], [0], [0], [1], [0, 0, 1, 1], [], []>} : vector<8x32xf32>, vector<32x32xf32>, vector<8x32xf32> -> vector<8x32xf32>
    %c0_19 = arith.constant 0 : index
    %c0_20 = arith.constant 0 : index
    %42 = vector.load %arg5[%c0_19, %c0_20] : memref<1x32xf32, #tpu.memory_space<vmem>>, vector<1x32xf32>
    %43 = vector.broadcast %42 : vector<1x32xf32> to vector<8x32xf32>
    %44 = arith.addf %41, %43 : vector<8x32xf32>
    %c0_21 = arith.constant 0 : index
    %c0_22 = arith.constant 0 : index
    %c0_23 = arith.constant 0 : index
    %45 = vector.load %arg6[%c0_21, %c0_22, %c0_23] : memref<1x8x32xf32, #tpu.memory_space<vmem>>, vector<1x8x32xf32>
    %46 = vector.shape_cast %45 : vector<1x8x32xf32> to vector<8x32xf32>
    %47 = vector.shape_cast %44 : vector<8x32xf32> to vector<1x8x32xf32>
    tpu.vector_store %arg6[%c0_21, %c0_22, %c0_23], %47 {strides = array<i32>} : memref<1x8x32xf32, #tpu.memory_space<vmem>>, vector<1x8x32xf32>,
    return
  }
  func.func @transform_0(%arg0: i32, %arg1: i32) -> (i32, i32, i32) {
    %c0_i32 = arith.constant 0 : i32
    %c0_i32_0 = arith.constant 0 : i32
    return %arg0, %arg1, %c0_i32 : i32, i32, i32
  }
  func.func @transform_1(%arg0: i32, %arg1: i32) -> (i32, i32) {
    %c0_i32 = arith.constant 0 : i32
    %c0_i32_0 = arith.constant 0 : i32
    %c0_i32_1 = arith.constant 0 : i32
    return %c0_i32, %c0_i32_0 : i32, i32
  }
  func.func @transform_2(%arg0: i32, %arg1: i32) -> (i32, i32) {
    %c0_i32 = arith.constant 0 : i32
    %c0_i32_0 = arith.constant 0 : i32
    %c0_i32_1 = arith.constant 0 : i32
    return %c0_i32, %c0_i32_0 : i32, i32
  }
  func.func @transform_3(%arg0: i32, %arg1: i32) -> (i32, i32) {
    %c0_i32 = arith.constant 0 : i32
    %c0_i32_0 = arith.constant 0 : i32
    %c0_i32_1 = arith.constant 0 : i32
    return %c0_i32, %c0_i32_0 : i32, i32
  }
  func.func @transform_4(%arg0: i32, %arg1: i32) -> (i32, i32, i32) {
    %c0_i32 = arith.constant 0 : i32
    %c0_i32_0 = arith.constant 0 : i32
    return %arg0, %arg1, %c0_i32 : i32, i32, i32
  }
}

</mosaic_0001>

<llo_original>
// kernel: tpu_custom_call.1
$region0: #{tpu_custom_call.1}
  #allocation0 [shape = 'u32[]', space=smem, size = 0x4, offset = 0x4, fixed_abs, tag = 'smem constant byte address 0x4 - core index']
  #allocation1 [shape = 'u32[144,128]{1,0:T(1,128)}', space=vmem, size = 0x12000, scoped, tag = 'internal scratch']
  #allocation2 [shape = 'f32[1,4,8,8]{3,2,1,0:T(8,128)}', space=vmem, size = 0x4000, scoped, tag = 'scratch operand']
  #allocation3 [shape = 'f32[1,4,8,8]{3,2,1,0:T(8,128)}', space=vmem, size = 0x4000, scoped, tag = 'scratch operand']
  %s0 = inlined_call_operand.hbm [shape: f32[2,8,32], index: 0, kind: input, shape index: {}]
  %s1 = inlined_call_operand.hbm [shape: f32[32,96], index: 1, kind: input, shape index: {}]
  %s2 = inlined_call_operand.hbm [shape: f32[32,32], index: 2, kind: input, shape index: {}]
  %s3 = inlined_call_operand.vmem [shape: f32[1,32], index: 3, kind: input, shape index: {}]
  %s4 = inlined_call_operand.hbm [shape: f32[2,8,32], index: 4, kind: output, shape index: {}]
  %s5 = sld [smem:[#allocation0]]
  $region68: #{tpu_custom_call.1} parent=0
    _
  %s7 = ssub.s32 1, %s5
  %s8 = scalar_select 0, %s7, %s5
  $region1: #{tpu_custom_call.1} parent=0
    #allocation4 [shape = 'u8[8192]{0}', space=vmem, size = 0x2000, scoped, tag = 'input window, operand 0']
    #allocation5 [shape = 's32[2]{0}', space=sflag, size = 0x8, scoped, tag = 'scoped memory for tpu_custom_call.1']
    #allocation6 [shape = 's32[2]{0}', space=sflag, size = 0x8, scoped, tag = 'scoped memory for tpu_custom_call.1']
    #allocation7 [shape = 'u8[16384]{0}', space=vmem, size = 0x4000, scoped, tag = 'input window, operand 1, single buffered']
    #allocation8 [shape = 's32[1]{0}', space=sflag, size = 0x4, scoped, tag = 'scoped memory for tpu_custom_call.1']
    #allocation9 [shape = 'u8[16384]{0}', space=vmem, size = 0x4000, scoped, tag = 'input window, operand 2, single buffered']
    #allocation10 [shape = 'u8[8192]{0}', space=vmem, size = 0x2000, scoped, tag = 'output window, operand 0']
    %9 = vsyncpa [#allocation5], 0
    %s10 = scalar_lea.sflag [#allocation5], 1
    %11 = vsyncpa %s10, 0
    %12 = vsyncpa [#allocation8], 0
    %13 = vsyncpa [#allocation6], 0
    %s14 = scalar_lea.sflag [#allocation6], 1
    %15 = vsyncpa %s14, 0
    loop: start=0, step=1, limit=4
    $region2: #{tpu_custom_call.1} parent=1 // loop_pre_header
      _
    $region3: #{tpu_custom_call.1} parent=1 // loop_header
      %s17 = sphi 0, %s21
      %p18 = scmp.ge.s32.totalorder %s17, 4
      %s24 = sphi 0, %s36
      %s25 = sphi 0, %s32
      %s26 = sphi 0, %s24
      %s27 = sphi 0, %s25
      %s28 = sphi 0, %s26
      %s29 = sphi 0, %s27
      %s41 = sphi 0, %s43
      %s44 = sphi 0, %s41
      %s45 = sphi 0, %s44
      %s61 = sphi 0, %s45
      %s65 = sphi 0, %s65
      %s67 = sphi 0, %s65
      %s68 = sphi 0, %s67
      %s82 = sphi 0, %s68
      %s86 = sphi 0, %s86
      %s88 = sphi 0, %s86
      %s89 = sphi 0, %s88
      %s103 = sphi 0, %s89
      %s107 = sphi 0, %s107
      %s109 = sphi 0, %s107
      %s110 = sphi 0, %s109
      %s124 = sphi 0, %s110
      %s132 = sphi 0, %s134
      %s135 = sphi 0, %s132
      %s136 = sphi 0, %s135
      %s152 = sphi 0, %s136
    $region4: #{tpu_custom_call.1} parent=1 // loop_header_branch
      %20 = sbr.rel (%p18) target = $region8
    $region5: #{tpu_custom_call.1} parent=1 // loop_body
      %s22 = ssub.s32 %s17, 1
      %s23 = ssub.s32 %s17, 2
      %s30 = sadd.s32 1, %s25
      %p31 = scmp.ge.s32.totalorder %s30, 1
      %s32 = scalar_select %p31, 0, %s30
      %s33 = sadd.s32 1, %s24
      %s34 = scalar_select %p31, %s33, %s24
      %p35 = scmp.ge.s32.totalorder %s34, 2
      %s36 = scalar_select %p35, 0, %s34
      %s37 = ssub.s32 %s24, %s36
      %s38 = ssub.s32 %s25, %s32
      %s39 = sor.u32 %s37, %s38
      %p40 = scmp.eq.s32.totalorder %s39, 0
      %s42 = sadd.s32 %s41, 1
      %s43 = scalar_select %p40, %s41, %s42
      %p46 = pneg %p40
      %p47 = scmp.eq.s32.totalorder %s17, 1
      %p48 = por %p46, %p47
      %p49 = scmp.ne.s32.totalorder %s41, %s44
      %p50 = scmp.eq.s32.totalorder %s17, 0
      %p51 = por %p49, %p50
      %p52 = scmp.ne.s32.totalorder %s41, %s44
      %p53 = scmp.eq.s32.totalorder %s22, 1
      %p54 = por %p52, %p53
      %p55 = scmp.ne.s32.totalorder %s44, %s45
      %p56 = scmp.eq.s32.totalorder %s22, 0
      %p57 = por %p55, %p56
      %p58 = scmp.ne.s32.totalorder %s44, %s45
      %p59 = scmp.eq.s32.totalorder %s23, 1
      %p60 = por %p58, %p59
      %p62 = scmp.ne.s32.totalorder %s45, %s61
      %p63 = scmp.eq.s32.totalorder %s23, 0
      %p64 = por %p62, %p63
      %s66 = sadd.s32 %s65, 1
      %p69 = scmp.eq.s32.totalorder %s17, 1
      %p70 = scmp.ne.s32.totalorder %s65, %s67
      %p71 = scmp.eq.s32.totalorder %s17, 0
      %p72 = por %p70, %p71
      %p73 = scmp.ne.s32.totalorder %s65, %s67
      %p74 = scmp.eq.s32.totalorder %s22, 1
      %p75 = por %p73, %p74
      %p76 = scmp.ne.s32.totalorder %s67, %s68
      %p77 = scmp.eq.s32.totalorder %s22, 0
      %p78 = por %p76, %p77
      %p79 = scmp.ne.s32.totalorder %s67, %s68
      %p80 = scmp.eq.s32.totalorder %s23, 1
      %p81 = por %p79, %p80
      %p83 = scmp.ne.s32.totalorder %s68, %s82
      %p84 = scmp.eq.s32.totalorder %s23, 0
      %p85 = por %p83, %p84
      %s87 = sadd.s32 %s86, 1
      %p90 = scmp.eq.s32.totalorder %s17, 1
      %p91 = scmp.ne.s32.totalorder %s86, %s88
      %p92 = scmp.eq.s32.totalorder %s17, 0
      %p93 = por %p91, %p92
      %p94 = scmp.ne.s32.totalorder %s86, %s88
      %p95 = scmp.eq.s32.totalorder %s22, 1
      %p96 = por %p94, %p95
      %p97 = scmp.ne.s32.totalorder %s88, %s89
      %p98 = scmp.eq.s32.totalorder %s22, 0
      %p99 = por %p97, %p98
      %p100 = scmp.ne.s32.totalorder %s88, %s89
      %p101 = scmp.eq.s32.totalorder %s23, 1
      %p102 = por %p100, %p101
      %p104 = scmp.ne.s32.totalorder %s89, %s103
      %p105 = scmp.eq.s32.totalorder %s23, 0
      %p106 = por %p104, %p105
      %s108 = sadd.s32 %s107, 1
      %p111 = scmp.eq.s32.totalorder %s17, 1
      %p112 = scmp.ne.s32.totalorder %s107, %s109
      %p113 = scmp.eq.s32.totalorder %s17, 0
      %p114 = por %p112, %p113
      %p115 = scmp.ne.s32.totalorder %s107, %s109
      %p116 = scmp.eq.s32.totalorder %s22, 1
      %p117 = por %p115, %p116
      %p118 = scmp.ne.s32.totalorder %s109, %s110
      %p119 = scmp.eq.s32.totalorder %s22, 0
      %p120 = por %p118, %p119
      %p121 = scmp.ne.s32.totalorder %s109, %s110
      %p122 = scmp.eq.s32.totalorder %s23, 1
      %p123 = por %p121, %p122
      %p125 = scmp.ne.s32.totalorder %s110, %s124
      %p126 = scmp.eq.s32.totalorder %s23, 0
      %p127 = por %p125, %p126
      %s128 = ssub.s32 %s24, %s36
      %s129 = ssub.s32 %s25, %s32
      %s130 = sor.u32 %s128, %s129
      %p131 = scmp.eq.s32.totalorder %s130, 0
      %s133 = sadd.s32 %s132, 1
      %s134 = scalar_select %p131, %s132, %s133
      %p137 = pneg %p131
      %p138 = scmp.eq.s32.totalorder %s17, 1
      %p139 = por %p137, %p138
      %p140 = scmp.ne.s32.totalorder %s132, %s135
      %p141 = scmp.eq.s32.totalorder %s17, 0
      %p142 = por %p140, %p141
      %p143 = scmp.ne.s32.totalorder %s132, %s135
      %p144 = scmp.eq.s32.totalorder %s22, 1
      %p145 = por %p143, %p144
      %p146 = scmp.ne.s32.totalorder %s135, %s136
      %p147 = scmp.eq.s32.totalorder %s22, 0
      %p148 = por %p146, %p147
      %p149 = scmp.ne.s32.totalorder %s135, %s136
      %p150 = scmp.eq.s32.totalorder %s23, 1
      %p151 = por %p149, %p150
      %p153 = scmp.ne.s32.totalorder %s136, %s152
      %p154 = scmp.eq.s32.totalorder %s23, 0
      %p155 = por %p153, %p154
      %p156 = scmp.le.s32.totalorder 1, %s17
      %p157 = scmp.lt.s32.totalorder %s17, 3
      %p158 = pnand %p156, %p157
      %p159 = pneg %p158
      // Predicated region
      $region9: #{tpu_custom_call.1} parent=5 // pred_check
        _
      $region10: #{tpu_custom_call.1} parent=5 // pred_check_branch
        %161 = sbr.rel (%p158) target = $region12
      $region11: #{tpu_custom_call.1} parent=5 // pred_region
        %s162 = ssub.s32 %s17, 1
        // Predicated region
        $region13: #{tpu_custom_call.1} parent=11 // pred_check
          %p163 = pneg %p78
        $region14: #{tpu_custom_call.1} parent=11 // pred_check_branch
          %165 = sbr.rel (%p163) target = $region16
        $region15: #{tpu_custom_call.1} parent=11 // pred_region
          %s167 = ssub.s32 512, 512
          %168 = vsyncadd [#allocation8], %s167
          %s169 = sshll.u32 [#allocation7], 4
          %s170 = int_to_ptr.vmem [resolvable:$true] %s169
          %175 = dma.hbm_to_vmem [thread:$0]  %s1, 512, %s170, [#allocation8], 128, 128, 8
        $region16: #{tpu_custom_call.1} parent=11 // pred_fallthru
          _
        // Predicated region
        $region17: #{tpu_custom_call.1} parent=11 // pred_check
          %p176 = pneg %p99
        $region18: #{tpu_custom_call.1} parent=11 // pred_check_branch
          %178 = sbr.rel (%p176) target = $region20
        $region19: #{tpu_custom_call.1} parent=11 // pred_region
          %s180 = ssub.s32 512, 512
          %181 = vsyncadd [#allocation8], %s180
          %s182 = sshll.u32 [#allocation9], 4
          %s183 = int_to_ptr.vmem [resolvable:$true] %s182
          %188 = dma.hbm_to_vmem [thread:$0]  %s2, 512, %s183, [#allocation8], 128, 128, 8
        $region20: #{tpu_custom_call.1} parent=11 // pred_fallthru
          _
        // Predicated region
        $region21: #{tpu_custom_call.1} parent=11 // pred_check
          %p189 = pneg %p120
        $region22: #{tpu_custom_call.1} parent=11 // pred_check_branch
          %191 = sbr.rel (%p189) target = $region24
        $region23: #{tpu_custom_call.1} parent=11 // pred_region
          _
        $region24: #{tpu_custom_call.1} parent=11 // pred_fallthru
          _
      $region12: #{tpu_custom_call.1} parent=5 // pred_fallthru
        _
      %p192 = scmp.lt.s32.totalorder %s17, 2
      // Predicated region
      $region25: #{tpu_custom_call.1} parent=5 // pred_check
        %p193 = pneg %p192
      $region26: #{tpu_custom_call.1} parent=5 // pred_check_branch
        %195 = sbr.rel (%p193) target = $region28
      $region27: #{tpu_custom_call.1} parent=5 // pred_region
        // Predicated region
        $region29: #{tpu_custom_call.1} parent=27 // pred_check
          %p196 = pneg %p51
        $region30: #{tpu_custom_call.1} parent=27 // pred_check_branch
          %198 = sbr.rel (%p196) target = $region32
        $region31: #{tpu_custom_call.1} parent=27 // pred_region
          %s199 = sand.u32 %s41, 1
          %s200 = scalar_lea.sflag [#allocation5], %s199
          %s201 = sand.u32 %s41, 1
          %s202 = smul.addr %s201, 8
          %s203 = scalar_lea.vmem [#allocation4], %s202
          %s205 = ssub.s32 128, 128
          %206 = vsyncadd %s200, %s205
          %s207 = sadd.s32 %s25, %s24
          %s208 = smul.addr %s207, 128
          %s209 = scalar_lea.hbm %s0, %s208
          %s211 = sshll.u32 %s203, 4
          %s212 = int_to_ptr.vmem [resolvable:$true] %s211
          %214 = dma.hbm_to_vmem [thread:$0]  %s209, 128, %s212, %s200
        $region32: #{tpu_custom_call.1} parent=27 // pred_fallthru
          _
      $region28: #{tpu_custom_call.1} parent=5 // pred_fallthru
        _
      %p215 = scmp.le.s32.totalorder 1, %s17
      %p216 = scmp.lt.s32.totalorder %s17, 3
      %p217 = pnand %p215, %p216
      %p218 = pneg %p217
      // Predicated region
      $region33: #{tpu_custom_call.1} parent=5 // pred_check
        _
      $region34: #{tpu_custom_call.1} parent=5 // pred_check_branch
        %220 = sbr.rel (%p217) target = $region36
      $region35: #{tpu_custom_call.1} parent=5 // pred_region
        %s221 = ssub.s32 %s17, 1
        %s222 = sand.u32 %s44, 1
        %s223 = scalar_lea.sflag [#allocation5], %s222
        %s224 = sand.u32 %s44, 1
        %s225 = smul.addr %s224, 8
        %s226 = scalar_lea.vmem [#allocation4], %s225
        // Predicated region
        $region37: #{tpu_custom_call.1} parent=35 // pred_check
          %p227 = pneg %p57
        $region38: #{tpu_custom_call.1} parent=35 // pred_check_branch
          %229 = sbr.rel (%p227) target = $region40
        $region39: #{tpu_custom_call.1} parent=35 // pred_region
          %230 = dma.done %s223, 128
        $region40: #{tpu_custom_call.1} parent=35 // pred_fallthru
          _
        // Predicated region
        $region41: #{tpu_custom_call.1} parent=35 // pred_check
          %p231 = pneg %p78
        $region42: #{tpu_custom_call.1} parent=35 // pred_check_branch
          %233 = sbr.rel (%p231) target = $region44
        $region43: #{tpu_custom_call.1} parent=35 // pred_region
          %234 = dma.done [#allocation8], 512
        $region44: #{tpu_custom_call.1} parent=35 // pred_fallthru
          _
        // Predicated region
        $region45: #{tpu_custom_call.1} parent=35 // pred_check
          %p235 = pneg %p99
        $region46: #{tpu_custom_call.1} parent=35 // pred_check_branch
          %237 = sbr.rel (%p235) target = $region48
        $region47: #{tpu_custom_call.1} parent=35 // pred_region
          %238 = dma.done [#allocation8], 512
        $region48: #{tpu_custom_call.1} parent=35 // pred_fallthru
          _
        %s239 = sand.u32 %s44, 1
        %s240 = scalar_lea.sflag [#allocation5], %s239
        %s241 = sand.u32 %s44, 1
        %s242 = smul.addr %s241, 8
        %s243 = scalar_lea.vmem [#allocation4], %s242
        %p244 = pneg %p57
        %p245 = pneg %p54
        %p246 = pneg %p78
        %p247 = pneg %p75
        %p248 = pneg %p99
        %p249 = pneg %p96
        %p250 = pneg %p120
        %p251 = pneg %p117
        %p252 = pneg %p148
        %p253 = pneg %p145
        %s254 = sand.u32 %s135, 1
        %s255 = scalar_lea.sflag [#allocation6], %s254
        %s256 = sand.u32 %s135, 1
        %s257 = smul.addr %s256, 8
        %s258 = scalar_lea.vmem [#allocation10], %s257
        %v259 = vld [vmem:[%s226] sm:$0xff]
        %v260 = vld [vmem:[#allocation7] sm:$0xff]
        %v261 = vld [vmem:[#allocation7 + $0x8] sm:$0xff]
        %v262 = vld [vmem:[#allocation7 + $0x10] sm:$0xff]
        %v263 = vld [vmem:[#allocation7 + $0x18] sm:$0xff]
        %vm264 = vcmask 261120
        %v266 = vsel %vm264, %v259, 0
        %268 = vmatprep.subr.mxu0 0.0
        %269 = vmatpush1.msra.mxu0 %v260
        %270 = vmatprep.subr.mxu0 0.0
        %271 = vmatpush1.msra.mxu0 %v261
        %272 = vmatprep.subr.mxu0 0.0
        %273 = vmatpush1.msra.mxu0 %v262
        %274 = vmatprep.subr.mxu0 0.0
        %275 = vmatpush1.msra.mxu0 %v263
        %276 = vmatprep.subr.mxu0 0.0
        %277 = vmatpush1.msra.mxu0 0.0
        %278 = vmatprep.subr.mxu0 0.0
        %279 = vmatpush1.msra.mxu0 0.0
        %280 = vmatprep.subr.mxu0 0.0
        %281 = vmatpush1.msra.mxu0 0.0
        %282 = vmatprep.subr.mxu0 0.0
        %283 = vmatpush1.msra.mxu0 0.0
        %284 = vmatprep.subr.mxu0 0.0
        %285 = vmatpush1.msra.mxu0 0.0
        %286 = vmatprep.subr.mxu0 0.0
        %287 = vmatpush1.msra.mxu0 0.0
        %288 = vmatprep.subr.mxu0 0.0
        %289 = vmatpush1.msra.mxu0 0.0
        %290 = vmatprep.subr.mxu0 0.0
        %291 = vmatpush1.msra.mxu0 0.0
        %292 = vmatprep.subr.mxu0 0.0
        %293 = vmatpush1.msra.mxu0 0.0
        %294 = vmatprep.subr.mxu0 0.0
        %295 = vmatpush1.msra.mxu0 0.0
        %296 = vmatprep.subr.mxu0 0.0
        %297 = vmatpush1.msra.mxu0 0.0
        %298 = vmatprep.subr.mxu0 0.0
        %299 = vmatpush1.msra.mxu0 0.0
        %300 = vmatprep.subr.mxu0 0.0
        %301 = vmatpush1.msra.mxu0 0.0
        %302 = vmatprep.subr.mxu0 0.0
        %303 = vmatpush1.msra.mxu0 0.0
        %304 = vmatprep.subr.mxu0 0.0
        %305 = vmatpush1.msra.mxu0 0.0
        %306 = vmatprep.subr.mxu0 0.0
        %307 = vmatpush1.msra.mxu0 0.0
        %308 = vmatprep.subr.mxu0 0.0
        %309 = vmatpush1.msra.mxu0 0.0
        %310 = vmatprep.subr.mxu0 0.0
        %311 = vmatpush1.msra.mxu0 0.0
        %312 = vmatprep.subr.mxu0 0.0
        %313 = vmatpush1.msra.mxu0 0.0
        %314 = vmatprep.subr.mxu0 0.0
        %315 = vmatpush1.msra.mxu0 0.0
        %316 = vmatprep.subr.mxu0 0.0
        %317 = vmatpush1.msra.mxu0 0.0
        %318 = vmatprep.subr.mxu0 0.0
        %319 = vmatpush1.msra.mxu0 0.0
        %320 = vmatprep.subr.mxu0 0.0
        %321 = vmatpush1.msra.mxu0 0.0
        %322 = vmatprep.subr.mxu0 0.0
        %323 = vmatpush1.msra.mxu0 0.0
        %324 = vmatprep.subr.mxu0 0.0
        %325 = vmatpush1.msra.mxu0 0.0
        %326 = vmatprep.subr.mxu0 0.0
        %327 = vmatpush1.msra.mxu0 0.0
        %328 = vmatprep.subr.mxu0 0.0
        %329 = vmatpush1.msra.mxu0 0.0
        %330 = vmatprep.subr.mxu0 0.0
        %331 = vmatpush1.msra.mxu0 0.0
        %332 = vmatprep.mubr.f32.mxu0 0.0
        %333 = vmatmul.mubr.f32.gmra.mrb[0].mxu0 %v266
        %v334 = vpop.f32.mrb[0].mxu0
        %v335 = vadd.f32 0.0, %v334
        %v336 = vpop.f32.mrb[0].mxu0
        %337 = vdwg.mxu0
        %v338 = vmul.f32 %v335, 0.17677669
        %340 = vrot.lane.b32.xlu0 %v338, 120
        %v341 = vpop.permute.xlu0 %340
        %343 = vrot.lane.b32.xlu0 %v338, 112
        %v344 = vpop.permute.xlu0 %343
        %346 = vrot.lane.b32.xlu0 %v338, 104
        %v347 = vpop.permute.xlu0 %346
        %v349 = vcombine.low %v338, %v344
        %v350 = vcombine.high %v338, %v344
        %v352 = vunpack.c.l.s4 1983009808
        %v353 = vunpack.c.0.s8 %v352
        %v354 = vlaneseq
        %v355 = vshrl.u32 %v354, 7
        %v356 = vsub.s32 %v353, %v355
        %v357 = vrot.slane %v349, %v356
        %v359 = vunpack.c.l.s4 1983009808
        %v360 = vunpack.c.0.s8 %v359
        %v361 = vlaneseq
        %v362 = vshrl.u32 %v361, 7
        %v363 = vsub.s32 %v360, %v362
        %v364 = vrot.slane %v350, %v363
        %v365 = vcombine.low %v341, %v347
        %v366 = vcombine.high %v341, %v347
        %v368 = vunpack.c.l.s4 1983009808
        %v369 = vunpack.c.0.s8 %v368
        %v370 = vlaneseq
        %v371 = vshrl.u32 %v370, 7
        %v372 = vsub.s32 %v369, %v371
        %v373 = vrot.slane %v365, %v372
        %v375 = vunpack.c.l.s4 1983009808
        %v376 = vunpack.c.0.s8 %v375
        %v377 = vlaneseq
        %v378 = vshrl.u32 %v377, 7
        %v379 = vsub.s32 %v376, %v378
        %v380 = vrot.slane %v366, %v379
        %v381 = vcombine.low %v357, %v373
        %v382 = vcombine.high %v357, %v373
        %v384 = vunpack.c.l.s4 1934713408
        %v385 = vunpack.c.0.s8 %v384
        %v386 = vlaneseq
        %v387 = vshrl.u32 %v386, 7
        %v388 = vsub.s32 %v385, %v387
        %v389 = vrot.slane %v381, %v388
        %v391 = vunpack.c.l.s4 1934713408
        %v392 = vunpack.c.0.s8 %v391
        %v393 = vlaneseq
        %v394 = vshrl.u32 %v393, 7
        %v395 = vsub.s32 %v392, %v394
        %v396 = vrot.slane %v382, %v395
        %v397 = vcombine.low %v364, %v380
        %v398 = vcombine.high %v364, %v380
        %v400 = vunpack.c.l.s4 1934713408
        %v401 = vunpack.c.0.s8 %v400
        %v402 = vlaneseq
        %v403 = vshrl.u32 %v402, 7
        %v404 = vsub.s32 %v401, %v403
        %v405 = vrot.slane %v397, %v404
        %v407 = vunpack.c.l.s4 1934713408
        %v408 = vunpack.c.0.s8 %v407
        %v409 = vlaneseq
        %v410 = vshrl.u32 %v409, 7
        %v411 = vsub.s32 %v408, %v410
        %v412 = vrot.slane %v398, %v411
        %v413 = vcombine.high %v389, 0.0
        %v414 = vcombine.high %v396, 0.0
        %v415 = vcombine.high %v405, 0.0
        %v416 = vcombine.high %v412, 0.0
        %v417 = vcombine.low %v389, %v396
        %v419 = vunpack.c.l.s4 1983009808
        %v420 = vunpack.c.0.s8 %v419
        %v421 = vlaneseq
        %v422 = vshrl.u32 %v421, 7
        %v423 = vsub.s32 %v420, %v422
        %v424 = vrot.slane %v417, %v423
        %v425 = vcombine.low %v413, %v414
        %v427 = vunpack.c.l.s4 1983009808
        %v428 = vunpack.c.0.s8 %v427
        %v429 = vlaneseq
        %v430 = vshrl.u32 %v429, 7
        %v431 = vsub.s32 %v428, %v430
        %v432 = vrot.slane %v425, %v431
        %v433 = vcombine.low %v405, %v412
        %v435 = vunpack.c.l.s4 1983009808
        %v436 = vunpack.c.0.s8 %v435
        %v437 = vlaneseq
        %v438 = vshrl.u32 %v437, 7
        %v439 = vsub.s32 %v436, %v438
        %v440 = vrot.slane %v433, %v439
        %v441 = vcombine.low %v415, %v416
        %v443 = vunpack.c.l.s4 1983009808
        %v444 = vunpack.c.0.s8 %v443
        %v445 = vlaneseq
        %v446 = vshrl.u32 %v445, 7
        %v447 = vsub.s32 %v444, %v446
        %v448 = vrot.slane %v441, %v447
        %v449 = vcombine.low %v424, %v432
        %v450 = vcombine.high %v424, %v432
        %v452 = vunpack.c.l.s4 1934713408
        %v453 = vunpack.c.0.s8 %v452
        %v454 = vlaneseq
        %v455 = vshrl.u32 %v454, 7
        %v456 = vsub.s32 %v453, %v455
        %v457 = vrot.slane %v449, %v456
        %v459 = vunpack.c.l.s4 1934713408
        %v460 = vunpack.c.0.s8 %v459
        %v461 = vlaneseq
        %v462 = vshrl.u32 %v461, 7
        %v463 = vsub.s32 %v460, %v462
        %v464 = vrot.slane %v450, %v463
        %v465 = vcombine.low %v440, %v448
        %v466 = vcombine.high %v440, %v448
        %v468 = vunpack.c.l.s4 1934713408
        %v469 = vunpack.c.0.s8 %v468
        %v470 = vlaneseq
        %v471 = vshrl.u32 %v470, 7
        %v472 = vsub.s32 %v469, %v471
        %v473 = vrot.slane %v465, %v472
        %v475 = vunpack.c.l.s4 1934713408
        %v476 = vunpack.c.0.s8 %v475
        %v477 = vlaneseq
        %v478 = vshrl.u32 %v477, 7
        %v479 = vsub.s32 %v476, %v478
        %v480 = vrot.slane %v466, %v479
        %v481 = vcombine.low %v457, %v473
        %v482 = vcombine.high %v457, %v473
        %v483 = vcombine.low %v464, %v480
        %v484 = vcombine.high %v464, %v480
        %486 = vrot.lane.b32.xlu0 %v335, 120
        %v487 = vpop.permute.xlu0 %486
        %488 = vrot.lane.b32.xlu0 %v335, 112
        %v489 = vpop.permute.xlu0 %488
        %490 = vrot.lane.b32.xlu0 %v335, 104
        %v491 = vpop.permute.xlu0 %490
        %492 = vrot.lane.b32.xlu0 %v335, 96
        %v493 = vpop.permute.xlu0 %492
        %494 = vrot.lane.b32.xlu0 %v487, 96
        %v495 = vpop.permute.xlu0 %494
        %496 = vrot.lane.b32.xlu0 %v489, 96
        %v497 = vpop.permute.xlu0 %496
        %498 = vrot.lane.b32.xlu0 %v491, 96
        %v499 = vpop.permute.xlu0 %498
        %v504 = vcombine.low %v493, %v497
        %v505 = vcombine.high %v493, %v497
        %v507 = vunpack.c.l.s4 1983009808
        %v508 = vunpack.c.0.s8 %v507
        %v509 = vlaneseq
        %v510 = vshrl.u32 %v509, 7
        %v511 = vsub.s32 %v508, %v510
        %v512 = vrot.slane %v504, %v511
        %v514 = vunpack.c.l.s4 1983009808
        %v515 = vunpack.c.0.s8 %v514
        %v516 = vlaneseq
        %v517 = vshrl.u32 %v516, 7
        %v518 = vsub.s32 %v515, %v517
        %v519 = vrot.slane %v505, %v518
        %v520 = vcombine.low %v495, %v499
        %v521 = vcombine.high %v495, %v499
        %v523 = vunpack.c.l.s4 1983009808
        %v524 = vunpack.c.0.s8 %v523
        %v525 = vlaneseq
        %v526 = vshrl.u32 %v525, 7
        %v527 = vsub.s32 %v524, %v526
        %v528 = vrot.slane %v520, %v527
        %v530 = vunpack.c.l.s4 1983009808
        %v531 = vunpack.c.0.s8 %v530
        %v532 = vlaneseq
        %v533 = vshrl.u32 %v532, 7
        %v534 = vsub.s32 %v531, %v533
        %v535 = vrot.slane %v521, %v534
        %v536 = vcombine.low %v512, %v528
        %v537 = vcombine.high %v512, %v528
        %v539 = vunpack.c.l.s4 1934713408
        %v540 = vunpack.c.0.s8 %v539
        %v541 = vlaneseq
        %v542 = vshrl.u32 %v541, 7
        %v543 = vsub.s32 %v540, %v542
        %v544 = vrot.slane %v536, %v543
        %v546 = vunpack.c.l.s4 1934713408
        %v547 = vunpack.c.0.s8 %v546
        %v548 = vlaneseq
        %v549 = vshrl.u32 %v548, 7
        %v550 = vsub.s32 %v547, %v549
        %v551 = vrot.slane %v537, %v550
        %v552 = vcombine.low %v519, %v535
        %v553 = vcombine.high %v519, %v535
        %v555 = vunpack.c.l.s4 1934713408
        %v556 = vunpack.c.0.s8 %v555
        %v557 = vlaneseq
        %v558 = vshrl.u32 %v557, 7
        %v559 = vsub.s32 %v556, %v558
        %v560 = vrot.slane %v552, %v559
        %v562 = vunpack.c.l.s4 1934713408
        %v563 = vunpack.c.0.s8 %v562
        %v564 = vlaneseq
        %v565 = vshrl.u32 %v564, 7
        %v566 = vsub.s32 %v563, %v565
        %v567 = vrot.slane %v553, %v566
        %v568 = vcombine.high %v544, 0.0
        %v569 = vcombine.high %v551, 0.0
        %v570 = vcombine.high %v560, 0.0
        %v571 = vcombine.high %v567, 0.0
        %v572 = vcombine.low %v544, %v551
        %v574 = vunpack.c.l.s4 1983009808
        %v575 = vunpack.c.0.s8 %v574
        %v576 = vlaneseq
        %v577 = vshrl.u32 %v576, 7
        %v578 = vsub.s32 %v575, %v577
        %v579 = vrot.slane %v572, %v578
        %v580 = vcombine.low %v568, %v569
        %v582 = vunpack.c.l.s4 1983009808
        %v583 = vunpack.c.0.s8 %v582
        %v584 = vlaneseq
        %v585 = vshrl.u32 %v584, 7
        %v586 = vsub.s32 %v583, %v585
        %v587 = vrot.slane %v580, %v586
        %v588 = vcombine.low %v560, %v567
        %v590 = vunpack.c.l.s4 1983009808
        %v591 = vunpack.c.0.s8 %v590
        %v592 = vlaneseq
        %v593 = vshrl.u32 %v592, 7
        %v594 = vsub.s32 %v591, %v593
        %v595 = vrot.slane %v588, %v594
        %v596 = vcombine.low %v570, %v571
        %v598 = vunpack.c.l.s4 1983009808
        %v599 = vunpack.c.0.s8 %v598
        %v600 = vlaneseq
        %v601 = vshrl.u32 %v600, 7
        %v602 = vsub.s32 %v599, %v601
        %v603 = vrot.slane %v596, %v602
        %v604 = vcombine.low %v579, %v587
        %v605 = vcombine.high %v579, %v587
        %v607 = vunpack.c.l.s4 1934713408
        %v608 = vunpack.c.0.s8 %v607
        %v609 = vlaneseq
        %v610 = vshrl.u32 %v609, 7
        %v611 = vsub.s32 %v608, %v610
        %v612 = vrot.slane %v604, %v611
        %v614 = vunpack.c.l.s4 1934713408
        %v615 = vunpack.c.0.s8 %v614
        %v616 = vlaneseq
        %v617 = vshrl.u32 %v616, 7
        %v618 = vsub.s32 %v615, %v617
        %v619 = vrot.slane %v605, %v618
        %v620 = vcombine.low %v595, %v603
        %v621 = vcombine.high %v595, %v603
        %v623 = vunpack.c.l.s4 1934713408
        %v624 = vunpack.c.0.s8 %v623
        %v625 = vlaneseq
        %v626 = vshrl.u32 %v625, 7
        %v627 = vsub.s32 %v624, %v626
        %v628 = vrot.slane %v620, %v627
        %v630 = vunpack.c.l.s4 1934713408
        %v631 = vunpack.c.0.s8 %v630
        %v632 = vlaneseq
        %v633 = vshrl.u32 %v632, 7
        %v634 = vsub.s32 %v631, %v633
        %v635 = vrot.slane %v621, %v634
        %v636 = vcombine.low %v612, %v628
        %v637 = vcombine.high %v612, %v628
        %v638 = vcombine.low %v619, %v635
        %v639 = vcombine.high %v619, %v635
        %640 = vrot.lane.b32.xlu0 %v335, 64
        %v641 = vpop.permute.xlu0 %640
        %642 = vrot.lane.b32.xlu0 %v487, 64
        %v643 = vpop.permute.xlu0 %642
        %644 = vrot.lane.b32.xlu0 %v489, 64
        %v645 = vpop.permute.xlu0 %644
        %646 = vrot.lane.b32.xlu0 %v491, 64
        %v647 = vpop.permute.xlu0 %646
        %v652 = vcombine.low %v641, %v645
        %v653 = vcombine.high %v641, %v645
        %v655 = vunpack.c.l.s4 1983009808
        %v656 = vunpack.c.0.s8 %v655
        %v657 = vlaneseq
        %v658 = vshrl.u32 %v657, 7
        %v659 = vsub.s32 %v656, %v658
        %v660 = vrot.slane %v652, %v659
        %v662 = vunpack.c.l.s4 1983009808
        %v663 = vunpack.c.0.s8 %v662
        %v664 = vlaneseq
        %v665 = vshrl.u32 %v664, 7
        %v666 = vsub.s32 %v663, %v665
        %v667 = vrot.slane %v653, %v666
        %v668 = vcombine.low %v643, %v647
        %v669 = vcombine.high %v643, %v647
        %v671 = vunpack.c.l.s4 1983009808
        %v672 = vunpack.c.0.s8 %v671
        %v673 = vlaneseq
        %v674 = vshrl.u32 %v673, 7
        %v675 = vsub.s32 %v672, %v674
        %v676 = vrot.slane %v668, %v675
        %v678 = vunpack.c.l.s4 1983009808
        %v679 = vunpack.c.0.s8 %v678
        %v680 = vlaneseq
        %v681 = vshrl.u32 %v680, 7
        %v682 = vsub.s32 %v679, %v681
        %v683 = vrot.slane %v669, %v682
        %v684 = vcombine.low %v660, %v676
        %v685 = vcombine.high %v660, %v676
        %v687 = vunpack.c.l.s4 1934713408
        %v688 = vunpack.c.0.s8 %v687
        %v689 = vlaneseq
        %v690 = vshrl.u32 %v689, 7
        %v691 = vsub.s32 %v688, %v690
        %v692 = vrot.slane %v684, %v691
        %v694 = vunpack.c.l.s4 1934713408
        %v695 = vunpack.c.0.s8 %v694
        %v696 = vlaneseq
        %v697 = vshrl.u32 %v696, 7
        %v698 = vsub.s32 %v695, %v697
        %v699 = vrot.slane %v685, %v698
        %v700 = vcombine.low %v667, %v683
        %v701 = vcombine.high %v667, %v683
        %v703 = vunpack.c.l.s4 1934713408
        %v704 = vunpack.c.0.s8 %v703
        %v705 = vlaneseq
        %v706 = vshrl.u32 %v705, 7
        %v707 = vsub.s32 %v704, %v706
        %v708 = vrot.slane %v700, %v707
        %v710 = vunpack.c.l.s4 1934713408
        %v711 = vunpack.c.0.s8 %v710
        %v712 = vlaneseq
        %v713 = vshrl.u32 %v712, 7
        %v714 = vsub.s32 %v711, %v713
        %v715 = vrot.slane %v701, %v714
        %v716 = vcombine.high %v692, 0.0
        %v717 = vcombine.high %v699, 0.0
        %v718 = vcombine.high %v708, 0.0
        %v719 = vcombine.high %v715, 0.0
        %v720 = vcombine.low %v692, %v699
        %v722 = vunpack.c.l.s4 1983009808
        %v723 = vunpack.c.0.s8 %v722
        %v724 = vlaneseq
        %v725 = vshrl.u32 %v724, 7
        %v726 = vsub.s32 %v723, %v725
        %v727 = vrot.slane %v720, %v726
        %v728 = vcombine.low %v716, %v717
        %v730 = vunpack.c.l.s4 1983009808
        %v731 = vunpack.c.0.s8 %v730
        %v732 = vlaneseq
        %v733 = vshrl.u32 %v732, 7
        %v734 = vsub.s32 %v731, %v733
        %v735 = vrot.slane %v728, %v734
        %v736 = vcombine.low %v708, %v715
        %v738 = vunpack.c.l.s4 1983009808
        %v739 = vunpack.c.0.s8 %v738
        %v740 = vlaneseq
        %v741 = vshrl.u32 %v740, 7
        %v742 = vsub.s32 %v739, %v741
        %v743 = vrot.slane %v736, %v742
        %v744 = vcombine.low %v718, %v719
        %v746 = vunpack.c.l.s4 1983009808
        %v747 = vunpack.c.0.s8 %v746
        %v748 = vlaneseq
        %v749 = vshrl.u32 %v748, 7
        %v750 = vsub.s32 %v747, %v749
        %v751 = vrot.slane %v744, %v750
        %v752 = vcombine.low %v727, %v735
        %v753 = vcombine.high %v727, %v735
        %v755 = vunpack.c.l.s4 1934713408
        %v756 = vunpack.c.0.s8 %v755
        %v757 = vlaneseq
        %v758 = vshrl.u32 %v757, 7
        %v759 = vsub.s32 %v756, %v758
        %v760 = vrot.slane %v752, %v759
        %v762 = vunpack.c.l.s4 1934713408
        %v763 = vunpack.c.0.s8 %v762
        %v764 = vlaneseq
        %v765 = vshrl.u32 %v764, 7
        %v766 = vsub.s32 %v763, %v765
        %v767 = vrot.slane %v753, %v766
        %v768 = vcombine.low %v743, %v751
        %v769 = vcombine.high %v743, %v751
        %v771 = vunpack.c.l.s4 1934713408
        %v772 = vunpack.c.0.s8 %v771
        %v773 = vlaneseq
        %v774 = vshrl.u32 %v773, 7
        %v775 = vsub.s32 %v772, %v774
        %v776 = vrot.slane %v768, %v775
        %v778 = vunpack.c.l.s4 1934713408
        %v779 = vunpack.c.0.s8 %v778
        %v780 = vlaneseq
        %v781 = vshrl.u32 %v780, 7
        %v782 = vsub.s32 %v779, %v781
        %v783 = vrot.slane %v769, %v782
        %v784 = vcombine.low %v760, %v776
        %v785 = vcombine.high %v760, %v776
        %v786 = vcombine.low %v767, %v783
        %v787 = vcombine.high %v767, %v783
        %s788 = smul.u32 %s27, 32
        %s789 = scalar_lea.vmem [#allocation2], %s788
        %vm790 = vcmask 64512
        %791 = vst.msk [vmem:[%s789] sm:$0xff] %vm790, %v636
        %792 = vst.msk [vmem:[%s789 + $0x8] sm:$0xff] %vm790, %v637
        %793 = vst.msk [vmem:[%s789 + $0x10] sm:$0xff] %vm790, %v638
        %794 = vst.msk [vmem:[%s789 + $0x18] sm:$0xff] %vm790, %v639
        %s795 = scalar_lea.vmem [#allocation3], %s788
        %796 = vst.msk [vmem:[%s795] sm:$0xff] %vm790, %v784
        %797 = vst.msk [vmem:[%s795 + $0x8] sm:$0xff] %vm790, %v785
        %798 = vst.msk [vmem:[%s795 + $0x10] sm:$0xff] %vm790, %v786
        %799 = vst.msk [vmem:[%s795 + $0x18] sm:$0xff] %vm790, %v787
        %s800 = smul.u32 %s27, 8
        %v801 = vlaneseq
        %v802 = vshrl.u32 %v801, 7
        %v803 = vstv %s800
        %v804 = vadd.s32 %v803, %v802
        %v805 = vlaneseq
        %v806 = vand.u32 %v805, 127
        %s807 = sadd.s32 %s27, 1
        // While loop
        $region49: #{tpu_custom_call.1} parent=35 // loop_pre_header
          _
        $region50: #{tpu_custom_call.1} parent=35 // loop_header
          %s809 = sphi 0, %s811
          %p810 = scmp.ge.s32.totalorder %s809, %s807
          %v814 = vphi -1e+30, %v1158
          %v815 = vphi -1e+30, %v1159
          %v816 = vphi -1e+30, %v1160
          %v817 = vphi -1e+30, %v1161
          %v818 = vphi 0.0, %v1202
          %v819 = vphi 0.0, %v1203
          %v820 = vphi 0.0, %v1204
          %v821 = vphi 0.0, %v1205
          %v822 = vphi 0.0, %v1502
          %v823 = vphi 0.0, %v1503
          %v824 = vphi 0.0, %v1504
          %v825 = vphi 0.0, %v1505
        $region51: #{tpu_custom_call.1} parent=35 // loop_header_branch
          %813 = sbr.rel (%p810) target = $region55
        $region52: #{tpu_custom_call.1} parent=35 // loop_body
          %s826 = smul.u32 %s809, 32
          %s827 = scalar_lea.vmem [#allocation2], %s826
          %v828 = vld [vmem:[%s827] sm:$0xff]
          %v829 = vld [vmem:[%s827 + $0x8] sm:$0xff]
          %v830 = vld [vmem:[%s827 + $0x10] sm:$0xff]
          %v831 = vld [vmem:[%s827 + $0x18] sm:$0xff]
          %s832 = scalar_lea.vmem [#allocation3], %s826
          %v833 = vld [vmem:[%s832] sm:$0xff]
          %v834 = vld [vmem:[%s832 + $0x8] sm:$0xff]
          %v835 = vld [vmem:[%s832 + $0x10] sm:$0xff]
          %v836 = vld [vmem:[%s832 + $0x18] sm:$0xff]
          %s837 = smul.u32 %s809, 8
          %v838 = vstv %s837
          %v839 = vadd.s32 %v838, %v806
          %vm840 = vcmp.ge.s32.totalorder %v804, %v839
          %v841 = vsel %vm840, 0.0, -1e+30
          %v843 = vsel %vm790, %v481, 0
          %v846 = vsel %vm790, %v828, 0
          %848 = vmatprep.subr.mxu0 0.0
          %849 = vmatpush1.xpose.msra.mxu0 %v846
          %850 = vmatprep.subr.mxu0 0.0
          %851 = vmatpush1.xpose.msra.mxu0 0.0
          %852 = vmatprep.subr.mxu0 0.0
          %853 = vmatpush1.xpose.msra.mxu0 0.0
          %854 = vmatprep.subr.mxu0 0.0
          %855 = vmatpush1.xpose.msra.mxu0 0.0
          %856 = vmatprep.subr.mxu0 0.0
          %857 = vmatpush1.xpose.msra.mxu0 0.0
          %858 = vmatprep.subr.mxu0 0.0
          %859 = vmatpush1.xpose.msra.mxu0 0.0
          %860 = vmatprep.subr.mxu0 0.0
          %861 = vmatpush1.xpose.msra.mxu0 0.0
          %862 = vmatprep.subr.mxu0 0.0
          %863 = vmatpush1.xpose.msra.mxu0 0.0
          %864 = vmatprep.subr.mxu0 0.0
          %865 = vmatpush1.xpose.msra.mxu0 0.0
          %866 = vmatprep.subr.mxu0 0.0
          %867 = vmatpush1.xpose.msra.mxu0 0.0
          %868 = vmatprep.subr.mxu0 0.0
          %869 = vmatpush1.xpose.msra.mxu0 0.0
          %870 = vmatprep.subr.mxu0 0.0
          %871 = vmatpush1.xpose.msra.mxu0 0.0
          %872 = vmatprep.subr.mxu0 0.0
          %873 = vmatpush1.xpose.msra.mxu0 0.0
          %874 = vmatprep.subr.mxu0 0.0
          %875 = vmatpush1.xpose.msra.mxu0 0.0
          %876 = vmatprep.subr.mxu0 0.0
          %877 = vmatpush1.xpose.msra.mxu0 0.0
          %878 = vmatprep.subr.mxu0 0.0
          %879 = vmatpush1.xpose.msra.mxu0 0.0
          %880 = vmatprep.subr.mxu0 0.0
          %881 = vmatpush1.xpose.msra.mxu0 0.0
          %882 = vmatprep.subr.mxu0 0.0
          %883 = vmatpush1.xpose.msra.mxu0 0.0
          %884 = vmatprep.subr.mxu0 0.0
          %885 = vmatpush1.xpose.msra.mxu0 0.0
          %886 = vmatprep.subr.mxu0 0.0
          %887 = vmatpush1.xpose.msra.mxu0 0.0
          %888 = vmatprep.subr.mxu0 0.0
          %889 = vmatpush1.xpose.msra.mxu0 0.0
          %890 = vmatprep.subr.mxu0 0.0
          %891 = vmatpush1.xpose.msra.mxu0 0.0
          %892 = vmatprep.subr.mxu0 0.0
          %893 = vmatpush1.xpose.msra.mxu0 0.0
          %894 = vmatprep.subr.mxu0 0.0
          %895 = vmatpush1.xpose.msra.mxu0 0.0
          %896 = vmatprep.subr.mxu0 0.0
          %897 = vmatpush1.xpose.msra.mxu0 0.0
          %898 = vmatprep.subr.mxu0 0.0
          %899 = vmatpush1.xpose.msra.mxu0 0.0
          %900 = vmatprep.subr.mxu0 0.0
          %901 = vmatpush1.xpose.msra.mxu0 0.0
          %902 = vmatprep.subr.mxu0 0.0
          %903 = vmatpush1.xpose.msra.mxu0 0.0
          %904 = vmatprep.subr.mxu0 0.0
          %905 = vmatpush1.xpose.msra.mxu0 0.0
          %906 = vmatprep.subr.mxu0 0.0
          %907 = vmatpush1.xpose.msra.mxu0 0.0
          %908 = vmatprep.subr.mxu0 0.0
          %909 = vmatpush1.xpose.msra.mxu0 0.0
          %910 = vmatprep.subr.mxu0 0.0
          %911 = vmatpush1.xpose.msra.mxu0 0.0
          %912 = vmatprep.mubr.f32.mxu0 0.0
          %913 = vmatmul.mubr.f32.gmra.mrb[0].mxu0 %v843
          %v914 = vpop.f32.mrb[0].mxu0
          %v915 = vadd.f32 %v841, %v914
          %v916 = vpop.f32.mrb[0].mxu0
          %917 = vdwg.mxu0
          %v919 = vsel %vm790, %v482, 0
          %v922 = vsel %vm790, %v829, 0
          %924 = vmatprep.subr.mxu0 0.0
          %925 = vmatpush1.xpose.msra.mxu0 %v922
          %926 = vmatprep.subr.mxu0 0.0
          %927 = vmatpush1.xpose.msra.mxu0 0.0
          %928 = vmatprep.subr.mxu0 0.0
          %929 = vmatpush1.xpose.msra.mxu0 0.0
          %930 = vmatprep.subr.mxu0 0.0
          %931 = vmatpush1.xpose.msra.mxu0 0.0
          %932 = vmatprep.subr.mxu0 0.0
          %933 = vmatpush1.xpose.msra.mxu0 0.0
          %934 = vmatprep.subr.mxu0 0.0
          %935 = vmatpush1.xpose.msra.mxu0 0.0
          %936 = vmatprep.subr.mxu0 0.0
          %937 = vmatpush1.xpose.msra.mxu0 0.0
          %938 = vmatprep.subr.mxu0 0.0
          %939 = vmatpush1.xpose.msra.mxu0 0.0
          %940 = vmatprep.subr.mxu0 0.0
          %941 = vmatpush1.xpose.msra.mxu0 0.0
          %942 = vmatprep.subr.mxu0 0.0
          %943 = vmatpush1.xpose.msra.mxu0 0.0
          %944 = vmatprep.subr.mxu0 0.0
          %945 = vmatpush1.xpose.msra.mxu0 0.0
          %946 = vmatprep.subr.mxu0 0.0
          %947 = vmatpush1.xpose.msra.mxu0 0.0
          %948 = vmatprep.subr.mxu0 0.0
          %949 = vmatpush1.xpose.msra.mxu0 0.0
          %950 = vmatprep.subr.mxu0 0.0
          %951 = vmatpush1.xpose.msra.mxu0 0.0
          %952 = vmatprep.subr.mxu0 0.0
          %953 = vmatpush1.xpose.msra.mxu0 0.0
          %954 = vmatprep.subr.mxu0 0.0
          %955 = vmatpush1.xpose.msra.mxu0 0.0
          %956 = vmatprep.subr.mxu0 0.0
          %957 = vmatpush1.xpose.msra.mxu0 0.0
          %958 = vmatprep.subr.mxu0 0.0
          %959 = vmatpush1.xpose.msra.mxu0 0.0
          %960 = vmatprep.subr.mxu0 0.0
          %961 = vmatpush1.xpose.msra.mxu0 0.0
          %962 = vmatprep.subr.mxu0 0.0
          %963 = vmatpush1.xpose.msra.mxu0 0.0
          %964 = vmatprep.subr.mxu0 0.0
          %965 = vmatpush1.xpose.msra.mxu0 0.0
          %966 = vmatprep.subr.mxu0 0.0
          %967 = vmatpush1.xpose.msra.mxu0 0.0
          %968 = vmatprep.subr.mxu0 0.0
          %969 = vmatpush1.xpose.msra.mxu0 0.0
          %970 = vmatprep.subr.mxu0 0.0
          %971 = vmatpush1.xpose.msra.mxu0 0.0
          %972 = vmatprep.subr.mxu0 0.0
          %973 = vmatpush1.xpose.msra.mxu0 0.0
          %974 = vmatprep.subr.mxu0 0.0
          %975 = vmatpush1.xpose.msra.mxu0 0.0
          %976 = vmatprep.subr.mxu0 0.0
          %977 = vmatpush1.xpose.msra.mxu0 0.0
          %978 = vmatprep.subr.mxu0 0.0
          %979 = vmatpush1.xpose.msra.mxu0 0.0
          %980 = vmatprep.subr.mxu0 0.0
          %981 = vmatpush1.xpose.msra.mxu0 0.0
          %982 = vmatprep.subr.mxu0 0.0
          %983 = vmatpush1.xpose.msra.mxu0 0.0
          %984 = vmatprep.subr.mxu0 0.0
          %985 = vmatpush1.xpose.msra.mxu0 0.0
          %986 = vmatprep.subr.mxu0 0.0
          %987 = vmatpush1.xpose.msra.mxu0 0.0
          %988 = vmatprep.mubr.f32.mxu0 0.0
          %989 = vmatmul.mubr.f32.gmra.mrb[0].mxu0 %v919
          %v990 = vpop.f32.mrb[0].mxu0
          %v991 = vadd.f32 %v841, %v990
          %v992 = vpop.f32.mrb[0].mxu0
          %993 = vdwg.mxu0
          %v995 = vsel %vm790, %v483, 0
          %v998 = vsel %vm790, %v830, 0
          %1000 = vmatprep.subr.mxu0 0.0
          %1001 = vmatpush1.xpose.msra.mxu0 %v998
          %1002 = vmatprep.subr.mxu0 0.0
          %1003 = vmatpush1.xpose.msra.mxu0 0.0
          %1004 = vmatprep.subr.mxu0 0.0
          %1005 = vmatpush1.xpose.msra.mxu0 0.0
          %1006 = vmatprep.subr.mxu0 0.0
          %1007 = vmatpush1.xpose.msra.mxu0 0.0
          %1008 = vmatprep.subr.mxu0 0.0
          %1009 = vmatpush1.xpose.msra.mxu0 0.0
          %1010 = vmatprep.subr.mxu0 0.0
          %1011 = vmatpush1.xpose.msra.mxu0 0.0
          %1012 = vmatprep.subr.mxu0 0.0
          %1013 = vmatpush1.xpose.msra.mxu0 0.0
          %1014 = vmatprep.subr.mxu0 0.0
          %1015 = vmatpush1.xpose.msra.mxu0 0.0
          %1016 = vmatprep.subr.mxu0 0.0
          %1017 = vmatpush1.xpose.msra.mxu0 0.0
          %1018 = vmatprep.subr.mxu0 0.0
          %1019 = vmatpush1.xpose.msra.mxu0 0.0
          %1020 = vmatprep.subr.mxu0 0.0
          %1021 = vmatpush1.xpose.msra.mxu0 0.0
          %1022 = vmatprep.subr.mxu0 0.0
          %1023 = vmatpush1.xpose.msra.mxu0 0.0
          %1024 = vmatprep.subr.mxu0 0.0
          %1025 = vmatpush1.xpose.msra.mxu0 0.0
          %1026 = vmatprep.subr.mxu0 0.0
          %1027 = vmatpush1.xpose.msra.mxu0 0.0
          %1028 = vmatprep.subr.mxu0 0.0
          %1029 = vmatpush1.xpose.msra.mxu0 0.0
          %1030 = vmatprep.subr.mxu0 0.0
          %1031 = vmatpush1.xpose.msra.mxu0 0.0
          %1032 = vmatprep.subr.mxu0 0.0
          %1033 = vmatpush1.xpose.msra.mxu0 0.0
          %1034 = vmatprep.subr.mxu0 0.0
          %1035 = vmatpush1.xpose.msra.mxu0 0.0
          %1036 = vmatprep.subr.mxu0 0.0
          %1037 = vmatpush1.xpose.msra.mxu0 0.0
          %1038 = vmatprep.subr.mxu0 0.0
          %1039 = vmatpush1.xpose.msra.mxu0 0.0
          %1040 = vmatprep.subr.mxu0 0.0
          %1041 = vmatpush1.xpose.msra.mxu0 0.0
          %1042 = vmatprep.subr.mxu0 0.0
          %1043 = vmatpush1.xpose.msra.mxu0 0.0
          %1044 = vmatprep.subr.mxu0 0.0
          %1045 = vmatpush1.xpose.msra.mxu0 0.0
          %1046 = vmatprep.subr.mxu0 0.0
          %1047 = vmatpush1.xpose.msra.mxu0 0.0
          %1048 = vmatprep.subr.mxu0 0.0
          %1049 = vmatpush1.xpose.msra.mxu0 0.0
          %1050 = vmatprep.subr.mxu0 0.0
          %1051 = vmatpush1.xpose.msra.mxu0 0.0
          %1052 = vmatprep.subr.mxu0 0.0
          %1053 = vmatpush1.xpose.msra.mxu0 0.0
          %1054 = vmatprep.subr.mxu0 0.0
          %1055 = vmatpush1.xpose.msra.mxu0 0.0
          %1056 = vmatprep.subr.mxu0 0.0
          %1057 = vmatpush1.xpose.msra.mxu0 0.0
          %1058 = vmatprep.subr.mxu0 0.0
          %1059 = vmatpush1.xpose.msra.mxu0 0.0
          %1060 = vmatprep.subr.mxu0 0.0
          %1061 = vmatpush1.xpose.msra.mxu0 0.0
          %1062 = vmatprep.subr.mxu0 0.0
          %1063 = vmatpush1.xpose.msra.mxu0 0.0
          %1064 = vmatprep.mubr.f32.mxu0 0.0
          %1065 = vmatmul.mubr.f32.gmra.mrb[0].mxu0 %v995
          %v1066 = vpop.f32.mrb[0].mxu0
          %v1067 = vadd.f32 %v841, %v1066
          %v1068 = vpop.f32.mrb[0].mxu0
          %1069 = vdwg.mxu0
          %v1071 = vsel %vm790, %v484, 0
          %v1074 = vsel %vm790, %v831, 0
          %1076 = vmatprep.subr.mxu0 0.0
          %1077 = vmatpush1.xpose.msra.mxu0 %v1074
          %1078 = vmatprep.subr.mxu0 0.0
          %1079 = vmatpush1.xpose.msra.mxu0 0.0
          %1080 = vmatprep.subr.mxu0 0.0
          %1081 = vmatpush1.xpose.msra.mxu0 0.0
          %1082 = vmatprep.subr.mxu0 0.0
          %1083 = vmatpush1.xpose.msra.mxu0 0.0
          %1084 = vmatprep.subr.mxu0 0.0
          %1085 = vmatpush1.xpose.msra.mxu0 0.0
          %1086 = vmatprep.subr.mxu0 0.0
          %1087 = vmatpush1.xpose.msra.mxu0 0.0
          %1088 = vmatprep.subr.mxu0 0.0
          %1089 = vmatpush1.xpose.msra.mxu0 0.0
          %1090 = vmatprep.subr.mxu0 0.0
          %1091 = vmatpush1.xpose.msra.mxu0 0.0
          %1092 = vmatprep.subr.mxu0 0.0
          %1093 = vmatpush1.xpose.msra.mxu0 0.0
          %1094 = vmatprep.subr.mxu0 0.0
          %1095 = vmatpush1.xpose.msra.mxu0 0.0
          %1096 = vmatprep.subr.mxu0 0.0
          %1097 = vmatpush1.xpose.msra.mxu0 0.0
          %1098 = vmatprep.subr.mxu0 0.0
          %1099 = vmatpush1.xpose.msra.mxu0 0.0
          %1100 = vmatprep.subr.mxu0 0.0
          %1101 = vmatpush1.xpose.msra.mxu0 0.0
          %1102 = vmatprep.subr.mxu0 0.0
          %1103 = vmatpush1.xpose.msra.mxu0 0.0
          %1104 = vmatprep.subr.mxu0 0.0
          %1105 = vmatpush1.xpose.msra.mxu0 0.0
          %1106 = vmatprep.subr.mxu0 0.0
          %1107 = vmatpush1.xpose.msra.mxu0 0.0
          %1108 = vmatprep.subr.mxu0 0.0
          %1109 = vmatpush1.xpose.msra.mxu0 0.0
          %1110 = vmatprep.subr.mxu0 0.0
          %1111 = vmatpush1.xpose.msra.mxu0 0.0
          %1112 = vmatprep.subr.mxu0 0.0
          %1113 = vmatpush1.xpose.msra.mxu0 0.0
          %1114 = vmatprep.subr.mxu0 0.0
          %1115 = vmatpush1.xpose.msra.mxu0 0.0
          %1116 = vmatprep.subr.mxu0 0.0
          %1117 = vmatpush1.xpose.msra.mxu0 0.0
          %1118 = vmatprep.subr.mxu0 0.0
          %1119 = vmatpush1.xpose.msra.mxu0 0.0
          %1120 = vmatprep.subr.mxu0 0.0
          %1121 = vmatpush1.xpose.msra.mxu0 0.0
          %1122 = vmatprep.subr.mxu0 0.0
          %1123 = vmatpush1.xpose.msra.mxu0 0.0
          %1124 = vmatprep.subr.mxu0 0.0
          %1125 = vmatpush1.xpose.msra.mxu0 0.0
          %1126 = vmatprep.subr.mxu0 0.0
          %1127 = vmatpush1.xpose.msra.mxu0 0.0
          %1128 = vmatprep.subr.mxu0 0.0
          %1129 = vmatpush1.xpose.msra.mxu0 0.0
          %1130 = vmatprep.subr.mxu0 0.0
          %1131 = vmatpush1.xpose.msra.mxu0 0.0
          %1132 = vmatprep.subr.mxu0 0.0
          %1133 = vmatpush1.xpose.msra.mxu0 0.0
          %1134 = vmatprep.subr.mxu0 0.0
          %1135 = vmatpush1.xpose.msra.mxu0 0.0
          %1136 = vmatprep.subr.mxu0 0.0
          %1137 = vmatpush1.xpose.msra.mxu0 0.0
          %1138 = vmatprep.subr.mxu0 0.0
          %1139 = vmatpush1.xpose.msra.mxu0 0.0
          %1140 = vmatprep.mubr.f32.mxu0 0.0
          %1141 = vmatmul.mubr.f32.gmra.mrb[0].mxu0 %v1071
          %v1142 = vpop.f32.mrb[0].mxu0
          %v1143 = vadd.f32 %v841, %v1142
          %v1144 = vpop.f32.mrb[0].mxu0
          %1145 = vdwg.mxu0
          %v1146 = vsel %vm790, %v915, -inf
          %1147 = vmax.xlane.f32.xlu0 %v1146
          %v1148 = vpop.xlane.xlu0 %1147
          %v1149 = vsel %vm790, %v991, -inf
          %1150 = vmax.xlane.f32.xlu0 %v1149
          %v1151 = vpop.xlane.xlu0 %1150
          %v1152 = vsel %vm790, %v1067, -inf
          %1153 = vmax.xlane.f32.xlu0 %v1152
          %v1154 = vpop.xlane.xlu0 %1153
          %v1155 = vsel %vm790, %v1143, -inf
          %1156 = vmax.xlane.f32.xlu0 %v1155
          %v1157 = vpop.xlane.xlu0 %1156
          %v1158 = vmax.f32 %v814, %v1148
          %v1159 = vmax.f32 %v815, %v1151
          %v1160 = vmax.f32 %v816, %v1154
          %v1161 = vmax.f32 %v817, %v1157
          %v1162 = vsub.f32 %v814, %v1158
          %v1163 = vsub.f32 %v815, %v1159
          %v1164 = vsub.f32 %v816, %v1160
          %v1165 = vsub.f32 %v817, %v1161
          %v1166 = vmul.f32 %v1162, 1.442695
          %v1167 = vpow.pop %v1166
          %v1168 = vmul.f32 %v1163, 1.442695
          %v1169 = vpow.pop %v1168
          %v1170 = vmul.f32 %v1164, 1.442695
          %v1171 = vpow.pop %v1170
          %v1172 = vmul.f32 %v1165, 1.442695
          %v1173 = vpow.pop %v1172
          %v1174 = vsub.f32 %v915, %v1158
          %v1175 = vsub.f32 %v991, %v1159
          %v1176 = vsub.f32 %v1067, %v1160
          %v1177 = vsub.f32 %v1143, %v1161
          %v1178 = vmul.f32 %v1174, 1.442695
          %v1179 = vpow.pop %v1178
          %v1180 = vmul.f32 %v1175, 1.442695
          %v1181 = vpow.pop %v1180
          %v1182 = vmul.f32 %v1176, 1.442695
          %v1183 = vpow.pop %v1182
          %v1184 = vmul.f32 %v1177, 1.442695
          %v1185 = vpow.pop %v1184
          %v1186 = vmul.f32 %v1167, %v818
          %v1187 = vmul.f32 %v1169, %v819
          %v1188 = vmul.f32 %v1171, %v820
          %v1189 = vmul.f32 %v1173, %v821
          %v1190 = vsel %vm790, %v1179, 0.0
          %1191 = vadd.xlane.f32.xlu0 %v1190
          %v1192 = vpop.xlane.xlu0 %1191
          %v1193 = vsel %vm790, %v1181, 0.0
          %1194 = vadd.xlane.f32.xlu0 %v1193
          %v1195 = vpop.xlane.xlu0 %1194
          %v1196 = vsel %vm790, %v1183, 0.0
          %1197 = vadd.xlane.f32.xlu0 %v1196
          %v1198 = vpop.xlane.xlu0 %1197
          %v1199 = vsel %vm790, %v1185, 0.0
          %1200 = vadd.xlane.f32.xlu0 %v1199
          %v1201 = vpop.xlane.xlu0 %1200
          %v1202 = vadd.f32 %v1186, %v1192
          %v1203 = vadd.f32 %v1187, %v1195
          %v1204 = vadd.f32 %v1188, %v1198
          %v1205 = vadd.f32 %v1189, %v1201
          %v1206 = vmul.f32 %v1167, %v822
          %v1207 = vmul.f32 %v1169, %v823
          %v1208 = vmul.f32 %v1171, %v824
          %v1209 = vmul.f32 %v1173, %v825
          %v1211 = vsel %vm790, %v1179, 0
          %1213 = vmatprep.subr.mxu0 0.0
          %1214 = vmatpush1.msra.mxu0 %v833
          %1215 = vmatprep.subr.mxu0 0.0
          %1216 = vmatpush1.msra.mxu0 0.0
          %1217 = vmatprep.subr.mxu0 0.0
          %1218 = vmatpush1.msra.mxu0 0.0
          %1219 = vmatprep.subr.mxu0 0.0
          %1220 = vmatpush1.msra.mxu0 0.0
          %1221 = vmatprep.subr.mxu0 0.0
          %1222 = vmatpush1.msra.mxu0 0.0
          %1223 = vmatprep.subr.mxu0 0.0
          %1224 = vmatpush1.msra.mxu0 0.0
          %1225 = vmatprep.subr.mxu0 0.0
          %1226 = vmatpush1.msra.mxu0 0.0
          %1227 = vmatprep.subr.mxu0 0.0
          %1228 = vmatpush1.msra.mxu0 0.0
          %1229 = vmatprep.subr.mxu0 0.0
          %1230 = vmatpush1.msra.mxu0 0.0
          %1231 = vmatprep.subr.mxu0 0.0
          %1232 = vmatpush1.msra.mxu0 0.0
          %1233 = vmatprep.subr.mxu0 0.0
          %1234 = vmatpush1.msra.mxu0 0.0
          %1235 = vmatprep.subr.mxu0 0.0
          %1236 = vmatpush1.msra.mxu0 0.0
          %1237 = vmatprep.subr.mxu0 0.0
          %1238 = vmatpush1.msra.mxu0 0.0
          %1239 = vmatprep.subr.mxu0 0.0
          %1240 = vmatpush1.msra.mxu0 0.0
          %1241 = vmatprep.subr.mxu0 0.0
          %1242 = vmatpush1.msra.mxu0 0.0
          %1243 = vmatprep.subr.mxu0 0.0
          %1244 = vmatpush1.msra.mxu0 0.0
          %1245 = vmatprep.subr.mxu0 0.0
          %1246 = vmatpush1.msra.mxu0 0.0
          %1247 = vmatprep.subr.mxu0 0.0
          %1248 = vmatpush1.msra.mxu0 0.0
          %1249 = vmatprep.subr.mxu0 0.0
          %1250 = vmatpush1.msra.mxu0 0.0
          %1251 = vmatprep.subr.mxu0 0.0
          %1252 = vmatpush1.msra.mxu0 0.0
          %1253 = vmatprep.subr.mxu0 0.0
          %1254 = vmatpush1.msra.mxu0 0.0
          %1255 = vmatprep.subr.mxu0 0.0
          %1256 = vmatpush1.msra.mxu0 0.0
          %1257 = vmatprep.subr.mxu0 0.0
          %1258 = vmatpush1.msra.mxu0 0.0
          %1259 = vmatprep.subr.mxu0 0.0
          %1260 = vmatpush1.msra.mxu0 0.0
          %1261 = vmatprep.subr.mxu0 0.0
          %1262 = vmatpush1.msra.mxu0 0.0
          %1263 = vmatprep.subr.mxu0 0.0
          %1264 = vmatpush1.msra.mxu0 0.0
          %1265 = vmatprep.subr.mxu0 0.0
          %1266 = vmatpush1.msra.mxu0 0.0
          %1267 = vmatprep.subr.mxu0 0.0
          %1268 = vmatpush1.msra.mxu0 0.0
          %1269 = vmatprep.subr.mxu0 0.0
          %1270 = vmatpush1.msra.mxu0 0.0
          %1271 = vmatprep.subr.mxu0 0.0
          %1272 = vmatpush1.msra.mxu0 0.0
          %1273 = vmatprep.subr.mxu0 0.0
          %1274 = vmatpush1.msra.mxu0 0.0
          %1275 = vmatprep.subr.mxu0 0.0
          %1276 = vmatpush1.msra.mxu0 0.0
          %1277 = vmatprep.mubr.f32.mxu0 0.0
          %1278 = vmatmul.mubr.f32.gmra.mrb[0].mxu0 %v1211
          %v1279 = vpop.f32.mrb[0].mxu0
          %v1280 = vadd.f32 0.0, %v1279
          %v1281 = vpop.f32.mrb[0].mxu0
          %1282 = vdwg.mxu0
          %v1284 = vsel %vm790, %v1181, 0
          %1286 = vmatprep.subr.mxu0 0.0
          %1287 = vmatpush1.msra.mxu0 %v834
          %1288 = vmatprep.subr.mxu0 0.0
          %1289 = vmatpush1.msra.mxu0 0.0
          %1290 = vmatprep.subr.mxu0 0.0
          %1291 = vmatpush1.msra.mxu0 0.0
          %1292 = vmatprep.subr.mxu0 0.0
          %1293 = vmatpush1.msra.mxu0 0.0
          %1294 = vmatprep.subr.mxu0 0.0
          %1295 = vmatpush1.msra.mxu0 0.0
          %1296 = vmatprep.subr.mxu0 0.0
          %1297 = vmatpush1.msra.mxu0 0.0
          %1298 = vmatprep.subr.mxu0 0.0
          %1299 = vmatpush1.msra.mxu0 0.0
          %1300 = vmatprep.subr.mxu0 0.0
          %1301 = vmatpush1.msra.mxu0 0.0
          %1302 = vmatprep.subr.mxu0 0.0
          %1303 = vmatpush1.msra.mxu0 0.0
          %1304 = vmatprep.subr.mxu0 0.0
          %1305 = vmatpush1.msra.mxu0 0.0
          %1306 = vmatprep.subr.mxu0 0.0
          %1307 = vmatpush1.msra.mxu0 0.0
          %1308 = vmatprep.subr.mxu0 0.0
          %1309 = vmatpush1.msra.mxu0 0.0
          %1310 = vmatprep.subr.mxu0 0.0
          %1311 = vmatpush1.msra.mxu0 0.0
          %1312 = vmatprep.subr.mxu0 0.0
          %1313 = vmatpush1.msra.mxu0 0.0
          %1314 = vmatprep.subr.mxu0 0.0
          %1315 = vmatpush1.msra.mxu0 0.0
          %1316 = vmatprep.subr.mxu0 0.0
          %1317 = vmatpush1.msra.mxu0 0.0
          %1318 = vmatprep.subr.mxu0 0.0
          %1319 = vmatpush1.msra.mxu0 0.0
          %1320 = vmatprep.subr.mxu0 0.0
          %1321 = vmatpush1.msra.mxu0 0.0
          %1322 = vmatprep.subr.mxu0 0.0
          %1323 = vmatpush1.msra.mxu0 0.0
          %1324 = vmatprep.subr.mxu0 0.0
          %1325 = vmatpush1.msra.mxu0 0.0
          %1326 = vmatprep.subr.mxu0 0.0
          %1327 = vmatpush1.msra.mxu0 0.0
          %1328 = vmatprep.subr.mxu0 0.0
          %1329 = vmatpush1.msra.mxu0 0.0
          %1330 = vmatprep.subr.mxu0 0.0
          %1331 = vmatpush1.msra.mxu0 0.0
          %1332 = vmatprep.subr.mxu0 0.0
          %1333 = vmatpush1.msra.mxu0 0.0
          %1334 = vmatprep.subr.mxu0 0.0
          %1335 = vmatpush1.msra.mxu0 0.0
          %1336 = vmatprep.subr.mxu0 0.0
          %1337 = vmatpush1.msra.mxu0 0.0
          %1338 = vmatprep.subr.mxu0 0.0
          %1339 = vmatpush1.msra.mxu0 0.0
          %1340 = vmatprep.subr.mxu0 0.0
          %1341 = vmatpush1.msra.mxu0 0.0
          %1342 = vmatprep.subr.mxu0 0.0
          %1343 = vmatpush1.msra.mxu0 0.0
          %1344 = vmatprep.subr.mxu0 0.0
          %1345 = vmatpush1.msra.mxu0 0.0
          %1346 = vmatprep.subr.mxu0 0.0
          %1347 = vmatpush1.msra.mxu0 0.0
          %1348 = vmatprep.subr.mxu0 0.0
          %1349 = vmatpush1.msra.mxu0 0.0
          %1350 = vmatprep.mubr.f32.mxu0 0.0
          %1351 = vmatmul.mubr.f32.gmra.mrb[0].mxu0 %v1284
          %v1352 = vpop.f32.mrb[0].mxu0
          %v1353 = vadd.f32 0.0, %v1352
          %v1354 = vpop.f32.mrb[0].mxu0
          %1355 = vdwg.mxu0
          %v1357 = vsel %vm790, %v1183, 0
          %1359 = vmatprep.subr.mxu0 0.0
          %1360 = vmatpush1.msra.mxu0 %v835
          %1361 = vmatprep.subr.mxu0 0.0
          %1362 = vmatpush1.msra.mxu0 0.0
          %1363 = vmatprep.subr.mxu0 0.0
          %1364 = vmatpush1.msra.mxu0 0.0
          %1365 = vmatprep.subr.mxu0 0.0
          %1366 = vmatpush1.msra.mxu0 0.0
          %1367 = vmatprep.subr.mxu0 0.0
          %1368 = vmatpush1.msra.mxu0 0.0
          %1369 = vmatprep.subr.mxu0 0.0
          %1370 = vmatpush1.msra.mxu0 0.0
          %1371 = vmatprep.subr.mxu0 0.0
          %1372 = vmatpush1.msra.mxu0 0.0
          %1373 = vmatprep.subr.mxu0 0.0
          %1374 = vmatpush1.msra.mxu0 0.0
          %1375 = vmatprep.subr.mxu0 0.0
          %1376 = vmatpush1.msra.mxu0 0.0
          %1377 = vmatprep.subr.mxu0 0.0
          %1378 = vmatpush1.msra.mxu0 0.0
          %1379 = vmatprep.subr.mxu0 0.0
          %1380 = vmatpush1.msra.mxu0 0.0
          %1381 = vmatprep.subr.mxu0 0.0
          %1382 = vmatpush1.msra.mxu0 0.0
          %1383 = vmatprep.subr.mxu0 0.0
          %1384 = vmatpush1.msra.mxu0 0.0
          %1385 = vmatprep.subr.mxu0 0.0
          %1386 = vmatpush1.msra.mxu0 0.0
          %1387 = vmatprep.subr.mxu0 0.0
          %1388 = vmatpush1.msra.mxu0 0.0
          %1389 = vmatprep.subr.mxu0 0.0
          %1390 = vmatpush1.msra.mxu0 0.0
          %1391 = vmatprep.subr.mxu0 0.0
          %1392 = vmatpush1.msra.mxu0 0.0
          %1393 = vmatprep.subr.mxu0 0.0
          %1394 = vmatpush1.msra.mxu0 0.0
          %1395 = vmatprep.subr.mxu0 0.0
          %1396 = vmatpush1.msra.mxu0 0.0
          %1397 = vmatprep.subr.mxu0 0.0
          %1398 = vmatpush1.msra.mxu0 0.0
          %1399 = vmatprep.subr.mxu0 0.0
          %1400 = vmatpush1.msra.mxu0 0.0
          %1401 = vmatprep.subr.mxu0 0.0
          %1402 = vmatpush1.msra.mxu0 0.0
          %1403 = vmatprep.subr.mxu0 0.0
          %1404 = vmatpush1.msra.mxu0 0.0
          %1405 = vmatprep.subr.mxu0 0.0
          %1406 = vmatpush1.msra.mxu0 0.0
          %1407 = vmatprep.subr.mxu0 0.0
          %1408 = vmatpush1.msra.mxu0 0.0
          %1409 = vmatprep.subr.mxu0 0.0
          %1410 = vmatpush1.msra.mxu0 0.0
          %1411 = vmatprep.subr.mxu0 0.0
          %1412 = vmatpush1.msra.mxu0 0.0
          %1413 = vmatprep.subr.mxu0 0.0
          %1414 = vmatpush1.msra.mxu0 0.0
          %1415 = vmatprep.subr.mxu0 0.0
          %1416 = vmatpush1.msra.mxu0 0.0
          %1417 = vmatprep.subr.mxu0 0.0
          %1418 = vmatpush1.msra.mxu0 0.0
          %1419 = vmatprep.subr.mxu0 0.0
          %1420 = vmatpush1.msra.mxu0 0.0
          %1421 = vmatprep.subr.mxu0 0.0
          %1422 = vmatpush1.msra.mxu0 0.0
          %1423 = vmatprep.mubr.f32.mxu0 0.0
          %1424 = vmatmul.mubr.f32.gmra.mrb[0].mxu0 %v1357
          %v1425 = vpop.f32.mrb[0].mxu0
          %v1426 = vadd.f32 0.0, %v1425
          %v1427 = vpop.f32.mrb[0].mxu0
          %1428 = vdwg.mxu0
          %v1430 = vsel %vm790, %v1185, 0
          %1432 = vmatprep.subr.mxu0 0.0
          %1433 = vmatpush1.msra.mxu0 %v836
          %1434 = vmatprep.subr.mxu0 0.0
          %1435 = vmatpush1.msra.mxu0 0.0
          %1436 = vmatprep.subr.mxu0 0.0
          %1437 = vmatpush1.msra.mxu0 0.0
          %1438 = vmatprep.subr.mxu0 0.0
          %1439 = vmatpush1.msra.mxu0 0.0
          %1440 = vmatprep.subr.mxu0 0.0
          %1441 = vmatpush1.msra.mxu0 0.0
          %1442 = vmatprep.subr.mxu0 0.0
          %1443 = vmatpush1.msra.mxu0 0.0
          %1444 = vmatprep.subr.mxu0 0.0
          %1445 = vmatpush1.msra.mxu0 0.0
          %1446 = vmatprep.subr.mxu0 0.0
          %1447 = vmatpush1.msra.mxu0 0.0
          %1448 = vmatprep.subr.mxu0 0.0
          %1449 = vmatpush1.msra.mxu0 0.0
          %1450 = vmatprep.subr.mxu0 0.0
          %1451 = vmatpush1.msra.mxu0 0.0
          %1452 = vmatprep.subr.mxu0 0.0
          %1453 = vmatpush1.msra.mxu0 0.0
          %1454 = vmatprep.subr.mxu0 0.0
          %1455 = vmatpush1.msra.mxu0 0.0
          %1456 = vmatprep.subr.mxu0 0.0
          %1457 = vmatpush1.msra.mxu0 0.0
          %1458 = vmatprep.subr.mxu0 0.0
          %1459 = vmatpush1.msra.mxu0 0.0
          %1460 = vmatprep.subr.mxu0 0.0
          %1461 = vmatpush1.msra.mxu0 0.0
          %1462 = vmatprep.subr.mxu0 0.0
          %1463 = vmatpush1.msra.mxu0 0.0
          %1464 = vmatprep.subr.mxu0 0.0
          %1465 = vmatpush1.msra.mxu0 0.0
          %1466 = vmatprep.subr.mxu0 0.0
          %1467 = vmatpush1.msra.mxu0 0.0
          %1468 = vmatprep.subr.mxu0 0.0
          %1469 = vmatpush1.msra.mxu0 0.0
          %1470 = vmatprep.subr.mxu0 0.0
          %1471 = vmatpush1.msra.mxu0 0.0
          %1472 = vmatprep.subr.mxu0 0.0
          %1473 = vmatpush1.msra.mxu0 0.0
          %1474 = vmatprep.subr.mxu0 0.0
          %1475 = vmatpush1.msra.mxu0 0.0
          %1476 = vmatprep.subr.mxu0 0.0
          %1477 = vmatpush1.msra.mxu0 0.0
          %1478 = vmatprep.subr.mxu0 0.0
          %1479 = vmatpush1.msra.mxu0 0.0
          %1480 = vmatprep.subr.mxu0 0.0
          %1481 = vmatpush1.msra.mxu0 0.0
          %1482 = vmatprep.subr.mxu0 0.0
          %1483 = vmatpush1.msra.mxu0 0.0
          %1484 = vmatprep.subr.mxu0 0.0
          %1485 = vmatpush1.msra.mxu0 0.0
          %1486 = vmatprep.subr.mxu0 0.0
          %1487 = vmatpush1.msra.mxu0 0.0
          %1488 = vmatprep.subr.mxu0 0.0
          %1489 = vmatpush1.msra.mxu0 0.0
          %1490 = vmatprep.subr.mxu0 0.0
          %1491 = vmatpush1.msra.mxu0 0.0
          %1492 = vmatprep.subr.mxu0 0.0
          %1493 = vmatpush1.msra.mxu0 0.0
          %1494 = vmatprep.subr.mxu0 0.0
          %1495 = vmatpush1.msra.mxu0 0.0
          %1496 = vmatprep.mubr.f32.mxu0 0.0
          %1497 = vmatmul.mubr.f32.gmra.mrb[0].mxu0 %v1430
          %v1498 = vpop.f32.mrb[0].mxu0
          %v1499 = vadd.f32 0.0, %v1498
          %v1500 = vpop.f32.mrb[0].mxu0
          %1501 = vdwg.mxu0
          %v1502 = vadd.f32 %v1206, %v1280
          %v1503 = vadd.f32 %v1207, %v1353
          %v1504 = vadd.f32 %v1208, %v1426
          %v1505 = vadd.f32 %v1209, %v1499
        $region53: #{tpu_custom_call.1} parent=35 // loop_footer
          %s811 = sadd.s32 %s809, 1
        $region54: #{tpu_custom_call.1} parent=35 // loop_footer_branch
          %808 = sbr.rel target = $region50
        $region55: #{tpu_custom_call.1} parent=35 // loop_exit
          _
        %v1506 = vrcp.pop %v818
        %v1507 = vrcp.pop %v819
        %v1508 = vrcp.pop %v820
        %v1509 = vrcp.pop %v821
        %v1510 = vmul.f32 %v822, %v1506
        %v1511 = vmul.f32 %v823, %v1507
        %v1512 = vmul.f32 %v824, %v1508
        %v1513 = vmul.f32 %v825, %v1509
        %v1514 = vcombine.low %v1510, %v1512
        %v1515 = vcombine.high %v1510, %v1512
        %v1517 = vunpack.c.l.s4 1983009808
        %v1518 = vunpack.c.0.s8 %v1517
        %v1519 = vlaneseq
        %v1520 = vshrl.u32 %v1519, 7
        %v1521 = vsub.s32 %v1518, %v1520
        %v1522 = vrot.slane %v1514, %v1521
        %v1524 = vunpack.c.l.s4 1983009808
        %v1525 = vunpack.c.0.s8 %v1524
        %v1526 = vlaneseq
        %v1527 = vshrl.u32 %v1526, 7
        %v1528 = vsub.s32 %v1525, %v1527
        %v1529 = vrot.slane %v1515, %v1528
        %v1530 = vcombine.low %v1511, %v1513
        %v1531 = vcombine.high %v1511, %v1513
        %v1533 = vunpack.c.l.s4 1983009808
        %v1534 = vunpack.c.0.s8 %v1533
        %v1535 = vlaneseq
        %v1536 = vshrl.u32 %v1535, 7
        %v1537 = vsub.s32 %v1534, %v1536
        %v1538 = vrot.slane %v1530, %v1537
        %v1540 = vunpack.c.l.s4 1983009808
        %v1541 = vunpack.c.0.s8 %v1540
        %v1542 = vlaneseq
        %v1543 = vshrl.u32 %v1542, 7
        %v1544 = vsub.s32 %v1541, %v1543
        %v1545 = vrot.slane %v1531, %v1544
        %v1546 = vcombine.low %v1522, %v1538
        %v1547 = vcombine.high %v1522, %v1538
        %v1549 = vunpack.c.l.s4 1934713408
        %v1550 = vunpack.c.0.s8 %v1549
        %v1551 = vlaneseq
        %v1552 = vshrl.u32 %v1551, 7
        %v1553 = vsub.s32 %v1550, %v1552
        %v1554 = vrot.slane %v1546, %v1553
        %v1556 = vunpack.c.l.s4 1934713408
        %v1557 = vunpack.c.0.s8 %v1556
        %v1558 = vlaneseq
        %v1559 = vshrl.u32 %v1558, 7
        %v1560 = vsub.s32 %v1557, %v1559
        %v1561 = vrot.slane %v1547, %v1560
        %v1562 = vcombine.low %v1529, %v1545
        %v1563 = vcombine.high %v1529, %v1545
        %v1565 = vunpack.c.l.s4 1934713408
        %v1566 = vunpack.c.0.s8 %v1565
        %v1567 = vlaneseq
        %v1568 = vshrl.u32 %v1567, 7
        %v1569 = vsub.s32 %v1566, %v1568
        %v1570 = vrot.slane %v1562, %v1569
        %v1572 = vunpack.c.l.s4 1934713408
        %v1573 = vunpack.c.0.s8 %v1572
        %v1574 = vlaneseq
        %v1575 = vshrl.u32 %v1574, 7
        %v1576 = vsub.s32 %v1573, %v1575
        %v1577 = vrot.slane %v1563, %v1576
        %v1578 = vcombine.high %v1554, 0.0
        %v1579 = vcombine.high %v1561, 0.0
        %v1580 = vcombine.high %v1570, 0.0
        %v1581 = vcombine.high %v1577, 0.0
        %v1582 = vcombine.low %v1554, %v1561
        %v1584 = vunpack.c.l.s4 1983009808
        %v1585 = vunpack.c.0.s8 %v1584
        %v1586 = vlaneseq
        %v1587 = vshrl.u32 %v1586, 7
        %v1588 = vsub.s32 %v1585, %v1587
        %v1589 = vrot.slane %v1582, %v1588
        %v1590 = vcombine.low %v1578, %v1579
        %v1592 = vunpack.c.l.s4 1983009808
        %v1593 = vunpack.c.0.s8 %v1592
        %v1594 = vlaneseq
        %v1595 = vshrl.u32 %v1594, 7
        %v1596 = vsub.s32 %v1593, %v1595
        %v1597 = vrot.slane %v1590, %v1596
        %v1598 = vcombine.low %v1570, %v1577
        %v1600 = vunpack.c.l.s4 1983009808
        %v1601 = vunpack.c.0.s8 %v1600
        %v1602 = vlaneseq
        %v1603 = vshrl.u32 %v1602, 7
        %v1604 = vsub.s32 %v1601, %v1603
        %v1605 = vrot.slane %v1598, %v1604
        %v1606 = vcombine.low %v1580, %v1581
        %v1608 = vunpack.c.l.s4 1983009808
        %v1609 = vunpack.c.0.s8 %v1608
        %v1610 = vlaneseq
        %v1611 = vshrl.u32 %v1610, 7
        %v1612 = vsub.s32 %v1609, %v1611
        %v1613 = vrot.slane %v1606, %v1612
        %v1614 = vcombine.low %v1589, %v1597
        %v1615 = vcombine.high %v1589, %v1597
        %v1617 = vunpack.c.l.s4 1934713408
        %v1618 = vunpack.c.0.s8 %v1617
        %v1619 = vlaneseq
        %v1620 = vshrl.u32 %v1619, 7
        %v1621 = vsub.s32 %v1618, %v1620
        %v1622 = vrot.slane %v1614, %v1621
        %v1624 = vunpack.c.l.s4 1934713408
        %v1625 = vunpack.c.0.s8 %v1624
        %v1626 = vlaneseq
        %v1627 = vshrl.u32 %v1626, 7
        %v1628 = vsub.s32 %v1625, %v1627
        %v1629 = vrot.slane %v1615, %v1628
        %v1630 = vcombine.low %v1605, %v1613
        %v1631 = vcombine.high %v1605, %v1613
        %v1633 = vunpack.c.l.s4 1934713408
        %v1634 = vunpack.c.0.s8 %v1633
        %v1635 = vlaneseq
        %v1636 = vshrl.u32 %v1635, 7
        %v1637 = vsub.s32 %v1634, %v1636
        %v1638 = vrot.slane %v1630, %v1637
        %v1640 = vunpack.c.l.s4 1934713408
        %v1641 = vunpack.c.0.s8 %v1640
        %v1642 = vlaneseq
        %v1643 = vshrl.u32 %v1642, 7
        %v1644 = vsub.s32 %v1641, %v1643
        %v1645 = vrot.slane %v1631, %v1644
        %v1646 = vcombine.low %v1622, %v1638
        %v1647 = vcombine.high %v1622, %v1638
        %v1648 = vcombine.low %v1629, %v1645
        %v1649 = vcombine.high %v1629, %v1645
        %1651 = vrot.lane.b32.xlu0 %v1647, 8
        %v1652 = vpop.permute.xlu0 %1651
        %1655 = vrot.lane.b32.xlu0 %v1648, 16
        %v1656 = vpop.permute.xlu0 %1655
        %1659 = vrot.lane.b32.xlu0 %v1649, 24
        %v1660 = vpop.permute.xlu0 %1659
        %v1662 = vsel %vm790, %v1646, %v1652
        %vm1663 = vcmask 130048
        %v1664 = vsel %vm1663, %v1662, %v1656
        %vm1665 = vcmask 195584
        %v1666 = vsel %vm1665, %v1664, %v1660
        %v1667 = vld [vmem:[#allocation9] sm:$0xff]
        %v1668 = vld [vmem:[#allocation9 + $0x8] sm:$0xff]
        %v1669 = vld [vmem:[#allocation9 + $0x10] sm:$0xff]
        %v1670 = vld [vmem:[#allocation9 + $0x18] sm:$0xff]
        %v1671 = vld [vmem:[%s3] sm:$0x1]
        %v1673 = vlaneseq
        %v1674 = vshrl.u32 %v1673, 7
        %v1675 = vsub.s32 0, %v1674
        %v1676 = vrot.slane %v1671, %v1675
        %v1679 = vsel %vm264, %v1666, 0
        %1681 = vmatprep.subr.mxu0 0.0
        %1682 = vmatpush1.msra.mxu0 %v1667
        %1683 = vmatprep.subr.mxu0 0.0
        %1684 = vmatpush1.msra.mxu0 %v1668
        %1685 = vmatprep.subr.mxu0 0.0
        %1686 = vmatpush1.msra.mxu0 %v1669
        %1687 = vmatprep.subr.mxu0 0.0
        %1688 = vmatpush1.msra.mxu0 %v1670
        %1689 = vmatprep.subr.mxu0 0.0
        %1690 = vmatpush1.msra.mxu0 0.0
        %1691 = vmatprep.subr.mxu0 0.0
        %1692 = vmatpush1.msra.mxu0 0.0
        %1693 = vmatprep.subr.mxu0 0.0
        %1694 = vmatpush1.msra.mxu0 0.0
        %1695 = vmatprep.subr.mxu0 0.0
        %1696 = vmatpush1.msra.mxu0 0.0
        %1697 = vmatprep.subr.mxu0 0.0
        %1698 = vmatpush1.msra.mxu0 0.0
        %1699 = vmatprep.subr.mxu0 0.0
        %1700 = vmatpush1.msra.mxu0 0.0
        %1701 = vmatprep.subr.mxu0 0.0
        %1702 = vmatpush1.msra.mxu0 0.0
        %1703 = vmatprep.subr.mxu0 0.0
        %1704 = vmatpush1.msra.mxu0 0.0
        %1705 = vmatprep.subr.mxu0 0.0
        %1706 = vmatpush1.msra.mxu0 0.0
        %1707 = vmatprep.subr.mxu0 0.0
        %1708 = vmatpush1.msra.mxu0 0.0
        %1709 = vmatprep.subr.mxu0 0.0
        %1710 = vmatpush1.msra.mxu0 0.0
        %1711 = vmatprep.subr.mxu0 0.0
        %1712 = vmatpush1.msra.mxu0 0.0
        %1713 = vmatprep.subr.mxu0 0.0
        %1714 = vmatpush1.msra.mxu0 0.0
        %1715 = vmatprep.subr.mxu0 0.0
        %1716 = vmatpush1.msra.mxu0 0.0
        %1717 = vmatprep.subr.mxu0 0.0
        %1718 = vmatpush1.msra.mxu0 0.0
        %1719 = vmatprep.subr.mxu0 0.0
        %1720 = vmatpush1.msra.mxu0 0.0
        %1721 = vmatprep.subr.mxu0 0.0
        %1722 = vmatpush1.msra.mxu0 0.0
        %1723 = vmatprep.subr.mxu0 0.0
        %1724 = vmatpush1.msra.mxu0 0.0
        %1725 = vmatprep.subr.mxu0 0.0
        %1726 = vmatpush1.msra.mxu0 0.0
        %1727 = vmatprep.subr.mxu0 0.0
        %1728 = vmatpush1.msra.mxu0 0.0
        %1729 = vmatprep.subr.mxu0 0.0
        %1730 = vmatpush1.msra.mxu0 0.0
        %1731 = vmatprep.subr.mxu0 0.0
        %1732 = vmatpush1.msra.mxu0 0.0
        %1733 = vmatprep.subr.mxu0 0.0
        %1734 = vmatpush1.msra.mxu0 0.0
        %1735 = vmatprep.subr.mxu0 0.0
        %1736 = vmatpush1.msra.mxu0 0.0
        %1737 = vmatprep.subr.mxu0 0.0
        %1738 = vmatpush1.msra.mxu0 0.0
        %1739 = vmatprep.subr.mxu0 0.0
        %1740 = vmatpush1.msra.mxu0 0.0
        %1741 = vmatprep.subr.mxu0 0.0
        %1742 = vmatpush1.msra.mxu0 0.0
        %1743 = vmatprep.subr.mxu0 0.0
        %1744 = vmatpush1.msra.mxu0 0.0
        %1745 = vmatprep.mubr.f32.mxu0 0.0
        %1746 = vmatmul.mubr.f32.gmra.mrb[0].mxu0 %v1679
        %v1747 = vpop.f32.mrb[0].mxu0
        %v1748 = vadd.f32 %v1676, %v1747
        %v1749 = vpop.f32.mrb[0].mxu0
        %1750 = vdwg.mxu0
        %1751 = vst.msk [vmem:[%s258] sm:$0xff] %vm264, %v1748
        %s1752 = sand.u32 %s135, 1
        %s1753 = scalar_lea.sflag [#allocation6], %s1752
        %s1754 = sand.u32 %s135, 1
        %s1755 = smul.addr %s1754, 8
        %s1756 = scalar_lea.vmem [#allocation10], %s1755
        // Predicated region
        $region56: #{tpu_custom_call.1} parent=35 // pred_check
          %p1757 = pneg %p145
        $region57: #{tpu_custom_call.1} parent=35 // pred_check_branch
          %1759 = sbr.rel (%p1757) target = $region59
        $region58: #{tpu_custom_call.1} parent=35 // pred_region
          %s1761 = ssub.s32 128, 128
          %1762 = vsyncadd %s1753, %s1761
          %s1763 = sadd.s32 %s27, %s26
          %s1764 = smul.addr %s1763, 128
          %s1765 = scalar_lea.hbm %s4, %s1764
          %s1767 = sshll.u32 %s1756, 4
          %s1768 = int_to_ptr.vmem [resolvable:$true] %s1767
          %1770 = dma.vmem_to_hbm [thread:$0]  %s1768, 128, %s1765, %s1753
        $region59: #{tpu_custom_call.1} parent=35 // pred_fallthru
          _
      $region36: #{tpu_custom_call.1} parent=5 // pred_fallthru
        _
      %p1771 = scmp.le.s32.totalorder 2, %s17
      // Predicated region
      $region60: #{tpu_custom_call.1} parent=5 // pred_check
        %p1772 = pneg %p1771
      $region61: #{tpu_custom_call.1} parent=5 // pred_check_branch
        %1774 = sbr.rel (%p1772) target = $region63
      $region62: #{tpu_custom_call.1} parent=5 // pred_region
        %s1775 = ssub.s32 %s17, 2
        // Predicated region
        $region64: #{tpu_custom_call.1} parent=62 // pred_check
          %p1776 = pneg %p151
        $region65: #{tpu_custom_call.1} parent=62 // pred_check_branch
          %1778 = sbr.rel (%p1776) target = $region67
        $region66: #{tpu_custom_call.1} parent=62 // pred_region
          %s1779 = sand.u32 %s136, 1
          %s1780 = scalar_lea.sflag [#allocation6], %s1779
          %s1781 = sand.u32 %s136, 1
          %s1782 = smul.addr %s1781, 8
          %s1783 = scalar_lea.vmem [#allocation10], %s1782
          %1784 = dma.done %s1780, 128
        $region67: #{tpu_custom_call.1} parent=62 // pred_fallthru
          _
      $region63: #{tpu_custom_call.1} parent=5 // pred_fallthru
        _
    $region6: #{tpu_custom_call.1} parent=1 // loop_footer
      %s21 = sadd.s32 1, %s17
    $region7: #{tpu_custom_call.1} parent=1 // loop_footer_branch
      %16 = sbr.rel target = $region3
    $region8: #{tpu_custom_call.1} parent=1 // loop_exit
      _
    %1785 = vsyncpa [#allocation5], 1
    %s1786 = scalar_lea.sflag [#allocation5], 1
    %1787 = vsyncpa %s1786, 1
    %1788 = vsyncpa [#allocation8], 1
    %1789 = vsyncpa [#allocation6], 1
    %s1790 = scalar_lea.sflag [#allocation6], 1
    %1791 = vsyncpa %s1790, 1

</llo_original>
